<compile_context>
chip_gen: v6e
topology: v6e:2x2x1
jax: 0.10.0
libtpu: 0.0.40
codegen_flags: <defaults>
</compile_context>

<pallas_src>
import jax
import jax.numpy as jnp
from jax.experimental import pallas as pl
from jax.experimental.pallas import tpu as pltpu

LANE = 128


def _round_up(x, m):
    return (x + m - 1) // m * m


def _mlp_kernel(x_ref,
                w1_ref, st1_ref,
                w2_ref, st2_ref,
                wo_ref, bo_ref,
                o_ref):
    """Fused forward: (Linear+BN(eval)+ReLU) x 2 -> Linear.

    bf16 MXU operands, f32 accumulation; BN affine + ReLU epilogue in f32 on the VPU.
    Hidden-layer Linear biases are pre-folded into the BN shift (st*[1]).
    """
    # In-kernel bf16 cast of the activation tile (no wrapper-side convert).
    x = x_ref[...].astype(jnp.bfloat16)

    # --- layer 1: Linear -> BN(folded affine) -> ReLU ---
    h = jnp.dot(x, w1_ref[...], preferred_element_type=jnp.float32)
    h = jnp.maximum(h * st1_ref[0:1, :] + st1_ref[1:2, :], 0.0)

    # --- layer 2 ---
    h = jnp.dot(h.astype(jnp.bfloat16), w2_ref[...],
                preferred_element_type=jnp.float32)
    h = jnp.maximum(h * st2_ref[0:1, :] + st2_ref[1:2, :], 0.0)

    # --- output Linear (real, unpadded d_out columns written directly) ---
    out = jnp.dot(h.astype(jnp.bfloat16), wo_ref[...],
                  preferred_element_type=jnp.float32)
    o_ref[...] = (out + bo_ref[...]).astype(o_ref.dtype)


def conditional_ffnn_forward(x, params, *, tm_cap=2048):
    """x: [N, D_in] float32. params: dict of folded/padded weights. Returns [N, d_out] f32."""
    N, D_in = x.shape
    w1, st1 = params["w1"], params["st1"]
    w2, st2 = params["w2"], params["st2"]
    wo, bo = params["wo"], params["bo"]
    d_out = wo.shape[1]
    H1p, H2p = w1.shape[1], w2.shape[1]

    # One grid step for small N (this problem is dispatch-bound); only split once N
    # exceeds the cap, where the "parallel" axis shards across v7x's two TensorCores.
    tm = _round_up(min(N, tm_cap), 16)
    grid = (pl.cdiv(N, tm),)

    flops = 2 * N * (D_in * H1p + H1p * H2p + H2p * d_out)
    bytes_accessed = (N * D_in * 4                       # x read as f32
                      + (w1.size + w2.size + wo.size) * 2  # bf16 weights
                      + (st1.size + st2.size + bo.size) * 4
                      + N * d_out * 4)                   # unpadded f32 output

    def row_spec(d):
        # batch-tiled, full-feature block
        return pl.BlockSpec((tm, d), lambda i: (i, 0))

    def full_spec(shape):
        # whole (small) parameter resident in VMEM, constant block index
        return pl.BlockSpec(shape, lambda i: (0,) * len(shape))

    return pl.pallas_call(
        _mlp_kernel,
        out_shape=jax.ShapeDtypeStruct((N, d_out), jnp.float32),
        grid_spec=pltpu.PrefetchScalarGridSpec(
            num_scalar_prefetch=0,
            grid=grid,
            in_specs=[
                row_spec(D_in),
                full_spec(w1.shape), full_spec(st1.shape),
                full_spec(w2.shape), full_spec(st2.shape),
                full_spec(wo.shape), full_spec(bo.shape),
            ],
            out_specs=row_spec(d_out),
        ),
        compiler_params=pltpu.CompilerParams(
            dimension_semantics=("parallel",)),
        cost_estimate=pl.CostEstimate(
            flops=flops, transcendentals=0, bytes_accessed=bytes_accessed),
    )(x, w1, st1, w2, st2, wo, bo)


def init_params(key, d_in, hidden_dims, d_out, eps=1e-5):
    """Synthetic params; BatchNorm1d(eval) + Linear bias folded to (scale, shift).

    Hidden widths zero-padded to a multiple of 128 (lane-dense intermediates); the
    padded channels are exactly zero after ReLU, so the math is unchanged.
    Also returns the unfolded f32 ("torch-semantics") params for reference checking.
    """
    assert len(hidden_dims) == 2, "fused kernel is specialized to 2 hidden layers"
    dims = [d_in] + list(hidden_dims)
    params = {"d_out": d_out}
    torch_like = {}
    keys = jax.random.split(key, 4 * len(hidden_dims) + 2)
    ki = 0
    prev_pad = d_in
    for li, h in enumerate(hidden_dims):
        fan_in = dims[li]
        hp = _round_up(h, LANE)
        w = jax.random.normal(keys[ki], (fan_in, h), jnp.float32) / jnp.sqrt(fan_in); ki += 1
        b = jax.random.normal(keys[ki], (1, h), jnp.float32) * 0.1; ki += 1
        gamma = 1.0 + 0.1 * jax.random.normal(keys[ki], (1, h), jnp.float32); ki += 1
        beta = 0.1 * jax.random.normal(keys[ki], (1, h), jnp.float32); ki += 1
        run_mean = jnp.zeros((1, h), jnp.float32)
        run_var = jnp.ones((1, h), jnp.float32)
        scale = gamma / jnp.sqrt(run_var + eps)
        shift = beta - run_mean * scale + b * scale      # Linear bias folded in
        # zero-pad fan-in rows and hidden cols; padded cols have scale=shift=0 -> stay 0
        w_pad = jnp.zeros((prev_pad, hp), jnp.float32).at[:fan_in, :h].set(w)
        st_pad = (jnp.zeros((2, hp), jnp.float32)
                  .at[0, :h].set(scale[0]).at[1, :h].set(shift[0]))
        idx = li + 1
        params[f"w{idx}"] = w_pad.astype(jnp.bfloat16)
        params[f"st{idx}"] = st_pad
        torch_like[f"w{idx}"], torch_like[f"b{idx}"] = w, b
        torch_like[f"g{idx}"], torch_like[f"beta{idx}"] = gamma, beta
        torch_like[f"mean{idx}"], torch_like[f"var{idx}"] = run_mean, run_var
        prev_pad = hp
    fan_in = hidden_dims[-1]
    wo = jax.random.normal(keys[ki], (fan_in, d_out), jnp.float32) / jnp.sqrt(fan_in); ki += 1
    bo = jax.random.normal(keys[ki], (1, d_out), jnp.float32) * 0.1
    wo_pad = jnp.zeros((prev_pad, d_out), jnp.float32).at[:fan_in, :].set(wo)
    params["wo"] = wo_pad.astype(jnp.bfloat16)
    params["bo"] = bo
    torch_like["wo"], torch_like["bo"] = wo, bo
    torch_like["eps"] = eps
    return params, torch_like


def reference_forward_bf16(x, params):
    """Plain-JAX reference following the same bf16-operand / f32-accumulate path."""
    h = jnp.dot(x.astype(jnp.bfloat16), params["w1"],
                preferred_element_type=jnp.float32)
    h = jnp.maximum(h * params["st1"][0:1] + params["st1"][1:2], 0.0)
    h = jnp.dot(h.astype(jnp.bfloat16), params["w2"],
                preferred_element_type=jnp.float32)
    h = jnp.maximum(h * params["st2"][0:1] + params["st2"][1:2], 0.0)
    return jnp.dot(h.astype(jnp.bfloat16), params["wo"],
                   preferred_element_type=jnp.float32) + params["bo"]


def reference_forward_torch(x, tl):
    """Full-f32 reference with the original (unfolded, unpadded) module semantics."""
    eps = tl["eps"]
    h = x @ tl["w1"] + tl["b1"]
    h = (h - tl["mean1"]) / jnp.sqrt(tl["var1"] + eps) * tl["g1"] + tl["beta1"]
    h = jnp.maximum(h, 0.0)
    h = h @ tl["w2"] + tl["b2"]
    h = (h - tl["mean2"]) / jnp.sqrt(tl["var2"] + eps) * tl["g2"] + tl["beta2"]
    h = jnp.maximum(h, 0.0)
    return h @ tl["wo"] + tl["bo"]


if __name__ == "__main__":
    # config-implied dims: input_dim = cell_embedding_dim + condition_dim + 1
    cell_embedding_dim = 16
    condition_dim = 15
    d_in = cell_embedding_dim + condition_dim + 1   # 32
    hidden_dims = [64, 32]
    d_out = 16
    N = 512

    key = jax.random.PRNGKey(0)
    kx, kp = jax.random.split(key)
    x = jax.random.normal(kx, (N, d_in), jnp.float32)
    params, torch_like = init_params(kp, d_in, hidden_dims, d_out)

    out = conditional_ffnn_forward(x, params)
    out = jax.block_until_ready(out)

    ref_bf16 = reference_forward_bf16(x, params)        # same numerics path (tight)
    ref_f32 = reference_forward_torch(x, torch_like)    # module semantics (loose, bf16 quant)
    assert out.shape == (N, d_out)
    assert jnp.allclose(out, ref_bf16, atol=5e-3, rtol=5e-3), "mismatch vs bf16 reference"
    assert jnp.allclose(out, ref_f32, atol=7e-2, rtol=7e-2), "mismatch vs f32 module reference"
    # TODO(synk): BatchNorm1d training-mode (batch-statistics) path not implemented;
    # this kernel is the eval/inference forward with running stats folded.
    print("KERNEL_OK")
</pallas_src>

<mosaic_0001>
module attributes {stable_mosaic.version = 11 : i64} {
  func.func @_mlp_kernel(%arg0: i32, %arg1: memref<512x32xf32, #tpu.memory_space<vmem>>, %arg2: memref<32x128xbf16, #tpu.memory_space<vmem>>, %arg3: memref<2x128xf32, #tpu.memory_space<vmem>>, %arg4: memref<128x128xbf16, #tpu.memory_space<vmem>>, %arg5: memref<2x128xf32, #tpu.memory_space<vmem>>, %arg6: memref<128x16xbf16, #tpu.memory_space<vmem>>, %arg7: memref<1x16xf32, #tpu.memory_space<vmem>>, %arg8: memref<512x16xf32, #tpu.memory_space<vmem>>) attributes {dimension_semantics = [#tpu.dimension_semantics<parallel>], iteration_bounds = array<i64: 1>, scalar_prefetch = 0 : i64, scratch_operands = 0 : i64, tpu.core_type = #tpu.core_type<tc>, window_params = [{transform_indices = @transform_0, window_bounds = array<i64: 512, 32>}, {pipeline_mode = #tpu.pipeline_mode<synchronous>, transform_indices = @transform_1, window_bounds = array<i64: 32, 128>}, {pipeline_mode = #tpu.pipeline_mode<synchronous>, transform_indices = @transform_2, window_bounds = array<i64: 2, 128>}, {pipeline_mode = #tpu.pipeline_mode<synchronous>, transform_indices = @transform_3, window_bounds = array<i64: 128, 128>}, {pipeline_mode = #tpu.pipeline_mode<synchronous>, transform_indices = @transform_4, window_bounds = array<i64: 2, 128>}, {pipeline_mode = #tpu.pipeline_mode<synchronous>, transform_indices = @transform_5, window_bounds = array<i64: 128, 16>}, {pipeline_mode = #tpu.pipeline_mode<synchronous>, transform_indices = @transform_6, window_bounds = array<i64: 1, 16>}, {transform_indices = @transform_7, window_bounds = array<i64: 512, 16>}]} {
    %c0 = arith.constant 0 : index
    %c0_0 = arith.constant 0 : index
    %0 = vector.load %arg1[%c0, %c0_0] : memref<512x32xf32, #tpu.memory_space<vmem>>, vector<512x32xf32>
    %1 = arith.truncf %0 : vector<512x32xf32> to vector<512x32xbf16>
    %c0_1 = arith.constant 0 : index
    %c0_2 = arith.constant 0 : index
    %2 = vector.load %arg2[%c0_1, %c0_2] : memref<32x128xbf16, #tpu.memory_space<vmem>>, vector<32x128xbf16>
    %cst = arith.constant dense<0.000000e+00> : vector<512x128xf32>
    %3 = tpu.matmul %1, %2, %cst {dimension_numbers = #tpu.dot_dimension_numbers<[1], [0], [0], [1], [0, 0, 1, 1], [], []>} : vector<512x32xbf16>, vector<32x128xbf16>, vector<512x128xf32> -> vector<512x128xf32>
    %c0_3 = arith.constant 0 : index
    %c0_4 = arith.constant 0 : index
    %4 = vector.load %arg3[%c0_3, %c0_4] : memref<2x128xf32, #tpu.memory_space<vmem>>, vector<1x128xf32>
    %5 = vector.broadcast %4 : vector<1x128xf32> to vector<512x128xf32>
    %6 = arith.mulf %3, %5 : vector<512x128xf32>
    %c1 = arith.constant 1 : index
    %c0_5 = arith.constant 0 : index
    %7 = vector.load %arg3[%c1, %c0_5] : memref<2x128xf32, #tpu.memory_space<vmem>>, vector<1x128xf32>
    %8 = vector.broadcast %7 : vector<1x128xf32> to vector<512x128xf32>
    %9 = arith.addf %6, %8 : vector<512x128xf32>
    %cst_6 = arith.constant 0.000000e+00 : f32
    %10 = vector.broadcast %cst_6 : f32 to vector<512x128xf32>
    %11 = arith.maximumf %9, %10 : vector<512x128xf32>
    %12 = arith.truncf %11 : vector<512x128xf32> to vector<512x128xbf16>
    %c0_7 = arith.constant 0 : index
    %c0_8 = arith.constant 0 : index
    %13 = vector.load %arg4[%c0_7, %c0_8] : memref<128x128xbf16, #tpu.memory_space<vmem>>, vector<128x128xbf16>
    %cst_9 = arith.constant dense<0.000000e+00> : vector<512x128xf32>
    %14 = tpu.matmul %12, %13, %cst_9 {dimension_numbers = #tpu.dot_dimension_numbers<[1], [0], [0], [1], [0, 0, 1, 1], [], []>} : vector<512x128xbf16>, vector<128x128xbf16>, vector<512x128xf32> -> vector<512x128xf32>
    %c0_10 = arith.constant 0 : index
    %c0_11 = arith.constant 0 : index
    %15 = vector.load %arg5[%c0_10, %c0_11] : memref<2x128xf32, #tpu.memory_space<vmem>>, vector<1x128xf32>
    %16 = vector.broadcast %15 : vector<1x128xf32> to vector<512x128xf32>
    %17 = arith.mulf %14, %16 : vector<512x128xf32>
    %c1_12 = arith.constant 1 : index
    %c0_13 = arith.constant 0 : index
    %18 = vector.load %arg5[%c1_12, %c0_13] : memref<2x128xf32, #tpu.memory_space<vmem>>, vector<1x128xf32>
    %19 = vector.broadcast %18 : vector<1x128xf32> to vector<512x128xf32>
    %20 = arith.addf %17, %19 : vector<512x128xf32>
    %cst_14 = arith.constant 0.000000e+00 : f32
    %21 = vector.broadcast %cst_14 : f32 to vector<512x128xf32>
    %22 = arith.maximumf %20, %21 : vector<512x128xf32>
    %23 = arith.truncf %22 : vector<512x128xf32> to vector<512x128xbf16>
    %c0_15 = arith.constant 0 : index
    %c0_16 = arith.constant 0 : index
    %24 = vector.load %arg6[%c0_15, %c0_16] : memref<128x16xbf16, #tpu.memory_space<vmem>>, vector<128x16xbf16>
    %cst_17 = arith.constant dense<0.000000e+00> : vector<512x16xf32>
    %25 = tpu.matmul %23, %24, %cst_17 {dimension_numbers = #tpu.dot_dimension_numbers<[1], [0], [0], [1], [0, 0, 1, 1], [], []>} : vector<512x128xbf16>, vector<128x16xbf16>, vector<512x16xf32> -> vector<512x16xf32>
    %c0_18 = arith.constant 0 : index
    %c0_19 = arith.constant 0 : index
    %26 = vector.load %arg7[%c0_18, %c0_19] : memref<1x16xf32, #tpu.memory_space<vmem>>, vector<1x16xf32>
    %27 = vector.broadcast %26 : vector<1x16xf32> to vector<512x16xf32>
    %28 = arith.addf %25, %27 : vector<512x16xf32>
    %c0_20 = arith.constant 0 : index
    %c0_21 = arith.constant 0 : index
    %29 = vector.load %arg8[%c0_20, %c0_21] : memref<512x16xf32, #tpu.memory_space<vmem>>, vector<512x16xf32>
    tpu.vector_store %arg8[%c0_20, %c0_21], %28 {strides = array<i32>} : memref<512x16xf32, #tpu.memory_space<vmem>>, vector<512x16xf32>,
    return
  }
  func.func @transform_0(%arg0: i32) -> (i32, i32) {
    %c0_i32 = arith.constant 0 : i32
    %c0_i32_0 = arith.constant 0 : i32
    return %arg0, %c0_i32 : i32, i32
  }
  func.func @transform_1(%arg0: i32) -> (i32, i32) {
    %c0_i32 = arith.constant 0 : i32
    %c0_i32_0 = arith.constant 0 : i32
    %c0_i32_1 = arith.constant 0 : i32
    return %c0_i32, %c0_i32_0 : i32, i32
  }
  func.func @transform_2(%arg0: i32) -> (i32, i32) {
    %c0_i32 = arith.constant 0 : i32
    %c0_i32_0 = arith.constant 0 : i32
    %c0_i32_1 = arith.constant 0 : i32
    return %c0_i32, %c0_i32_0 : i32, i32
  }
  func.func @transform_3(%arg0: i32) -> (i32, i32) {
    %c0_i32 = arith.constant 0 : i32
    %c0_i32_0 = arith.constant 0 : i32
    %c0_i32_1 = arith.constant 0 : i32
    return %c0_i32, %c0_i32_0 : i32, i32
  }
  func.func @transform_4(%arg0: i32) -> (i32, i32) {
    %c0_i32 = arith.constant 0 : i32
    %c0_i32_0 = arith.constant 0 : i32
    %c0_i32_1 = arith.constant 0 : i32
    return %c0_i32, %c0_i32_0 : i32, i32
  }
  func.func @transform_5(%arg0: i32) -> (i32, i32) {
    %c0_i32 = arith.constant 0 : i32
    %c0_i32_0 = arith.constant 0 : i32
    %c0_i32_1 = arith.constant 0 : i32
    return %c0_i32, %c0_i32_0 : i32, i32
  }
  func.func @transform_6(%arg0: i32) -> (i32, i32) {
    %c0_i32 = arith.constant 0 : i32
    %c0_i32_0 = arith.constant 0 : i32
    %c0_i32_1 = arith.constant 0 : i32
    return %c0_i32, %c0_i32_0 : i32, i32
  }
  func.func @transform_7(%arg0: i32) -> (i32, i32) {
    %c0_i32 = arith.constant 0 : i32
    %c0_i32_0 = arith.constant 0 : i32
    return %arg0, %c0_i32 : i32, i32
  }
}

</mosaic_0001>

<llo_original>
// kernel: tpu_custom_call.1
$region0: #{tpu_custom_call.1}
  #allocation0 [shape = 'u32[]', space=smem, size = 0x4, offset = 0x4, fixed_abs, tag = 'smem constant byte address 0x4 - core index']
  #allocation1 [shape = 'u32[144,128]{1,0:T(1,128)}', space=vmem, size = 0x12000, scoped, tag = 'internal scratch']
  %s0 = inlined_call_operand.vmem [shape: f32[512,32], index: 0, kind: input, shape index: {}]
  %s1 = inlined_call_operand.vmem [shape: bf16[32,128], index: 1, kind: input, shape index: {}]
  %s2 = inlined_call_operand.vmem [shape: f32[2,128], index: 2, kind: input, shape index: {}]
  %s3 = inlined_call_operand.vmem [shape: bf16[128,128], index: 3, kind: input, shape index: {}]
  %s4 = inlined_call_operand.vmem [shape: f32[2,128], index: 4, kind: input, shape index: {}]
  %s5 = inlined_call_operand.vmem [shape: bf16[128,16], index: 5, kind: input, shape index: {}]
  %s6 = inlined_call_operand.vmem [shape: f32[1,16], index: 6, kind: input, shape index: {}]
  %s7 = inlined_call_operand.vmem [shape: f32[512,16], index: 7, kind: output, shape index: {}]
  %s8 = sld [smem:[#allocation0]]
  $region38: #{tpu_custom_call.1} parent=0
    _
  %s10 = ssub.s32 1, %s8
  %s11 = scalar_select 0, %s10, %s8
  // Predicated region
  $region2: #{tpu_custom_call.1} parent=0 // pred_check
    _
  $region3: #{tpu_custom_call.1} parent=0 // pred_check_branch
    %13 = sbr.rel (0) target = $region5
  $region4: #{tpu_custom_call.1} parent=0 // pred_region
    _
  $region5: #{tpu_custom_call.1} parent=0 // pred_fallthru
    _
  // Predicated region
  $region6: #{tpu_custom_call.1} parent=0 // pred_check
    _
  $region7: #{tpu_custom_call.1} parent=0 // pred_check_branch
    %15 = sbr.rel (0) target = $region9
  $region8: #{tpu_custom_call.1} parent=0 // pred_region
    _
  $region9: #{tpu_custom_call.1} parent=0 // pred_fallthru
    _
  // Predicated region
  $region10: #{tpu_custom_call.1} parent=0 // pred_check
    _
  $region11: #{tpu_custom_call.1} parent=0 // pred_check_branch
    %17 = sbr.rel (0) target = $region13
  $region12: #{tpu_custom_call.1} parent=0 // pred_region
    _
  $region13: #{tpu_custom_call.1} parent=0 // pred_fallthru
    _
  // Predicated region
  $region14: #{tpu_custom_call.1} parent=0 // pred_check
    _
  $region15: #{tpu_custom_call.1} parent=0 // pred_check_branch
    %19 = sbr.rel (0) target = $region17
  $region16: #{tpu_custom_call.1} parent=0 // pred_region
    _
  $region17: #{tpu_custom_call.1} parent=0 // pred_fallthru
    _
  // Predicated region
  $region18: #{tpu_custom_call.1} parent=0 // pred_check
    _
  $region19: #{tpu_custom_call.1} parent=0 // pred_check_branch
    %21 = sbr.rel (0) target = $region21
  $region20: #{tpu_custom_call.1} parent=0 // pred_region
    _
  $region21: #{tpu_custom_call.1} parent=0 // pred_fallthru
    _
  // Predicated region
  $region22: #{tpu_custom_call.1} parent=0 // pred_check
    _
  $region23: #{tpu_custom_call.1} parent=0 // pred_check_branch
    %23 = sbr.rel (0) target = $region25
  $region24: #{tpu_custom_call.1} parent=0 // pred_region
    _
  $region25: #{tpu_custom_call.1} parent=0 // pred_fallthru
    _
  // Predicated region
  $region26: #{tpu_custom_call.1} parent=0 // pred_check
    _
  $region27: #{tpu_custom_call.1} parent=0 // pred_check_branch
    %25 = sbr.rel (0) target = $region29
  $region28: #{tpu_custom_call.1} parent=0 // pred_region
    _
  $region29: #{tpu_custom_call.1} parent=0 // pred_fallthru
    _
  %v27 = vld [vmem:[%s0] sm:$0xff]
  %v28 = vld [vmem:[%s0 + $0x8] sm:$0xff]
  %v29 = vld [vmem:[%s0 + $0x10] sm:$0xff]
  %v30 = vld [vmem:[%s0 + $0x18] sm:$0xff]
  %v31 = vld [vmem:[%s0 + $0x20] sm:$0xff]
  %v32 = vld [vmem:[%s0 + $0x28] sm:$0xff]
  %v33 = vld [vmem:[%s0 + $0x30] sm:$0xff]
  %v34 = vld [vmem:[%s0 + $0x38] sm:$0xff]
  %v35 = vld [vmem:[%s0 + $0x40] sm:$0xff]
  %v36 = vld [vmem:[%s0 + $0x48] sm:$0xff]
  %v37 = vld [vmem:[%s0 + $0x50] sm:$0xff]
  %v38 = vld [vmem:[%s0 + $0x58] sm:$0xff]
  %v39 = vld [vmem:[%s0 + $0x60] sm:$0xff]
  %v40 = vld [vmem:[%s0 + $0x68] sm:$0xff]
  %v41 = vld [vmem:[%s0 + $0x70] sm:$0xff]
  %v42 = vld [vmem:[%s0 + $0x78] sm:$0xff]
  %v43 = vld [vmem:[%s0 + $0x80] sm:$0xff]
  %v44 = vld [vmem:[%s0 + $0x88] sm:$0xff]
  %v45 = vld [vmem:[%s0 + $0x90] sm:$0xff]
  %v46 = vld [vmem:[%s0 + $0x98] sm:$0xff]
  %v47 = vld [vmem:[%s0 + $0xa0] sm:$0xff]
  %v48 = vld [vmem:[%s0 + $0xa8] sm:$0xff]
  %v49 = vld [vmem:[%s0 + $0xb0] sm:$0xff]
  %v50 = vld [vmem:[%s0 + $0xb8] sm:$0xff]
  %v51 = vld [vmem:[%s0 + $0xc0] sm:$0xff]
  %v52 = vld [vmem:[%s0 + $0xc8] sm:$0xff]
  %v53 = vld [vmem:[%s0 + $0xd0] sm:$0xff]
  %v54 = vld [vmem:[%s0 + $0xd8] sm:$0xff]
  %v55 = vld [vmem:[%s0 + $0xe0] sm:$0xff]
  %v56 = vld [vmem:[%s0 + $0xe8] sm:$0xff]
  %v57 = vld [vmem:[%s0 + $0xf0] sm:$0xff]
  %v58 = vld [vmem:[%s0 + $0xf8] sm:$0xff]
  %v59 = vld [vmem:[%s0 + $0x100] sm:$0xff]
  %v60 = vld [vmem:[%s0 + $0x108] sm:$0xff]
  %v61 = vld [vmem:[%s0 + $0x110] sm:$0xff]
  %v62 = vld [vmem:[%s0 + $0x118] sm:$0xff]
  %v63 = vld [vmem:[%s0 + $0x120] sm:$0xff]
  %v64 = vld [vmem:[%s0 + $0x128] sm:$0xff]
  %v65 = vld [vmem:[%s0 + $0x130] sm:$0xff]
  %v66 = vld [vmem:[%s0 + $0x138] sm:$0xff]
  %v67 = vld [vmem:[%s0 + $0x140] sm:$0xff]
  %v68 = vld [vmem:[%s0 + $0x148] sm:$0xff]
  %v69 = vld [vmem:[%s0 + $0x150] sm:$0xff]
  %v70 = vld [vmem:[%s0 + $0x158] sm:$0xff]
  %v71 = vld [vmem:[%s0 + $0x160] sm:$0xff]
  %v72 = vld [vmem:[%s0 + $0x168] sm:$0xff]
  %v73 = vld [vmem:[%s0 + $0x170] sm:$0xff]
  %v74 = vld [vmem:[%s0 + $0x178] sm:$0xff]
  %v75 = vld [vmem:[%s0 + $0x180] sm:$0xff]
  %v76 = vld [vmem:[%s0 + $0x188] sm:$0xff]
  %v77 = vld [vmem:[%s0 + $0x190] sm:$0xff]
  %v78 = vld [vmem:[%s0 + $0x198] sm:$0xff]
  %v79 = vld [vmem:[%s0 + $0x1a0] sm:$0xff]
  %v80 = vld [vmem:[%s0 + $0x1a8] sm:$0xff]
  %v81 = vld [vmem:[%s0 + $0x1b0] sm:$0xff]
  %v82 = vld [vmem:[%s0 + $0x1b8] sm:$0xff]
  %v83 = vld [vmem:[%s0 + $0x1c0] sm:$0xff]
  %v84 = vld [vmem:[%s0 + $0x1c8] sm:$0xff]
  %v85 = vld [vmem:[%s0 + $0x1d0] sm:$0xff]
  %v86 = vld [vmem:[%s0 + $0x1d8] sm:$0xff]
  %v87 = vld [vmem:[%s0 + $0x1e0] sm:$0xff]
  %v88 = vld [vmem:[%s0 + $0x1e8] sm:$0xff]
  %v89 = vld [vmem:[%s0 + $0x1f0] sm:$0xff]
  %v90 = vld [vmem:[%s0 + $0x1f8] sm:$0xff]
  %v91 = vpack.c.bf16 %v28, %v27
  %v92 = vpack.c.bf16 %v30, %v29
  %v93 = vpack.c.bf16 %v32, %v31
  %v94 = vpack.c.bf16 %v34, %v33
  %v95 = vpack.c.bf16 %v36, %v35
  %v96 = vpack.c.bf16 %v38, %v37
  %v97 = vpack.c.bf16 %v40, %v39
  %v98 = vpack.c.bf16 %v42, %v41
  %v99 = vpack.c.bf16 %v44, %v43
  %v100 = vpack.c.bf16 %v46, %v45
  %v101 = vpack.c.bf16 %v48, %v47
  %v102 = vpack.c.bf16 %v50, %v49
  %v103 = vpack.c.bf16 %v52, %v51
  %v104 = vpack.c.bf16 %v54, %v53
  %v105 = vpack.c.bf16 %v56, %v55
  %v106 = vpack.c.bf16 %v58, %v57
  %v107 = vpack.c.bf16 %v60, %v59
  %v108 = vpack.c.bf16 %v62, %v61
  %v109 = vpack.c.bf16 %v64, %v63
  %v110 = vpack.c.bf16 %v66, %v65
  %v111 = vpack.c.bf16 %v68, %v67
  %v112 = vpack.c.bf16 %v70, %v69
  %v113 = vpack.c.bf16 %v72, %v71
  %v114 = vpack.c.bf16 %v74, %v73
  %v115 = vpack.c.bf16 %v76, %v75
  %v116 = vpack.c.bf16 %v78, %v77
  %v117 = vpack.c.bf16 %v80, %v79
  %v118 = vpack.c.bf16 %v82, %v81
  %v119 = vpack.c.bf16 %v84, %v83
  %v120 = vpack.c.bf16 %v86, %v85
  %v121 = vpack.c.bf16 %v88, %v87
  %v122 = vpack.c.bf16 %v90, %v89
  %v123 = vld [vmem:[%s1] sm:$0xf]
  %v124 = vld [vmem:[%s1 + $0x4] sm:$0xf]
  %v125 = vld [vmem:[%s1 + $0x8] sm:$0xf]
  %v126 = vld [vmem:[%s1 + $0xc] sm:$0xf]
  %v131 = vunpack.c.l.b16 %v123
  %v132 = vunpack.c.l.b16 %v124
  %v133 = vunpack.c.l.b16 %v125
  %v134 = vunpack.c.l.b16 %v126
  %v135 = vpack.c.b16 %v132, %v131
  %v136 = vpack.c.b16 %v134, %v133
  %vm139 = vcmask 261120
  %v141 = vsel %vm139, %v91, 0
  %v144 = vsel %vm139, %v92, 0
  %v147 = vsel %vm139, %v93, 0
  %v150 = vsel %vm139, %v94, 0
  %v153 = vsel %vm139, %v95, 0
  %v156 = vsel %vm139, %v96, 0
  %v159 = vsel %vm139, %v97, 0
  %v162 = vsel %vm139, %v98, 0
  %v165 = vsel %vm139, %v99, 0
  %v168 = vsel %vm139, %v100, 0
  %v171 = vsel %vm139, %v101, 0
  %v174 = vsel %vm139, %v102, 0
  %v177 = vsel %vm139, %v103, 0
  %v180 = vsel %vm139, %v104, 0
  %v183 = vsel %vm139, %v105, 0
  %v186 = vsel %vm139, %v106, 0
  %v189 = vsel %vm139, %v107, 0
  %v192 = vsel %vm139, %v108, 0
  %v195 = vsel %vm139, %v109, 0
  %v198 = vsel %vm139, %v110, 0
  %v201 = vsel %vm139, %v111, 0
  %v204 = vsel %vm139, %v112, 0
  %v207 = vsel %vm139, %v113, 0
  %v210 = vsel %vm139, %v114, 0
  %v213 = vsel %vm139, %v115, 0
  %v216 = vsel %vm139, %v116, 0
  %v219 = vsel %vm139, %v117, 0
  %v222 = vsel %vm139, %v118, 0
  %v225 = vsel %vm139, %v119, 0
  %v228 = vsel %vm139, %v120, 0
  %v231 = vsel %vm139, %v121, 0
  %v234 = vsel %vm139, %v122, 0
  %236 = vmatprep.subr.bf16.mxu0 0
  %237 = vmatpush1.bf16.msra.mxu0 0
  %238 = vmatprep.subr.bf16.mxu0 0
  %239 = vmatpush1.bf16.msra.mxu0 0
  %240 = vmatprep.subr.bf16.mxu0 0
  %241 = vmatpush1.bf16.msra.mxu0 0
  %242 = vmatprep.subr.bf16.mxu0 0
  %243 = vmatpush1.bf16.msra.mxu0 0
  %244 = vmatprep.subr.bf16.mxu0 0
  %245 = vmatpush1.bf16.msra.mxu0 0
  %246 = vmatprep.subr.bf16.mxu0 0
  %247 = vmatpush1.bf16.msra.mxu0 0
  %248 = vmatprep.subr.bf16.mxu0 0
  %249 = vmatpush1.bf16.msra.mxu0 %v136
  %250 = vmatprep.subr.bf16.mxu0 0
  %251 = vmatpush1.bf16.msra.mxu0 %v135
  %252 = vmatprep.subr.bf16.mxu0 0
  %253 = vmatpush2.bf16.msra.mxu0 0
  %254 = vmatprep.subr.bf16.mxu0 0
  %255 = vmatpush2.bf16.msra.mxu0 0
  %256 = vmatprep.subr.bf16.mxu0 0
  %257 = vmatpush2.bf16.msra.mxu0 0
  %258 = vmatprep.subr.bf16.mxu0 0
  %259 = vmatpush2.bf16.msra.mxu0 0
  %260 = vmatprep.subr.bf16.mxu0 0
  %261 = vmatpush2.bf16.msra.mxu0 0
  %262 = vmatprep.subr.bf16.mxu0 0
  %263 = vmatpush2.bf16.msra.mxu0 0
  %264 = vmatprep.subr.bf16.mxu0 0
  %265 = vmatpush2.bf16.msra.mxu0 0
  %266 = vmatprep.subr.bf16.mxu0 0
  %267 = vmatpush2.bf16.msra.mxu0 0
  %268 = vmatprep.mubr.bf16.mxu0 0
  %269 = vmatmul.mubr.bf16.gmra.mxu0 %v141
  %v270 = vpop.f32.mrf.mxu0
  %v271 = vadd.f32 0.0, %v270
  %v272 = vpop.f32.mrf.mxu0
  %v273 = vpop.f32.mrf.mxu0
  %v274 = vadd.f32 0.0, %v273
  %v275 = vpop.f32.mrf.mxu0
  %276 = vmatprep.mubr.bf16.mxu0 0
  %277 = vmatmul.mubr.bf16.gmra.mxu0 %v144
  %v278 = vpop.f32.mrf.mxu0
  %v279 = vadd.f32 0.0, %v278
  %v280 = vpop.f32.mrf.mxu0
  %v281 = vpop.f32.mrf.mxu0
  %v282 = vadd.f32 0.0, %v281
  %v283 = vpop.f32.mrf.mxu0
  %284 = vmatprep.mubr.bf16.mxu0 0
  %285 = vmatmul.mubr.bf16.gmra.mxu0 %v147
  %v286 = vpop.f32.mrf.mxu0
  %v287 = vadd.f32 0.0, %v286
  %v288 = vpop.f32.mrf.mxu0
  %v289 = vpop.f32.mrf.mxu0
  %v290 = vadd.f32 0.0, %v289
  %v291 = vpop.f32.mrf.mxu0
  %292 = vmatprep.mubr.bf16.mxu0 0
  %293 = vmatmul.mubr.bf16.gmra.mxu0 %v150
  %v294 = vpop.f32.mrf.mxu0
  %v295 = vadd.f32 0.0, %v294
  %v296 = vpop.f32.mrf.mxu0
  %v297 = vpop.f32.mrf.mxu0
  %v298 = vadd.f32 0.0, %v297
  %v299 = vpop.f32.mrf.mxu0
  %300 = vmatprep.mubr.bf16.mxu0 0
  %301 = vmatmul.mubr.bf16.gmra.mxu0 %v153
  %v302 = vpop.f32.mrf.mxu0
  %v303 = vadd.f32 0.0, %v302
  %v304 = vpop.f32.mrf.mxu0
  %v305 = vpop.f32.mrf.mxu0
  %v306 = vadd.f32 0.0, %v305
  %v307 = vpop.f32.mrf.mxu0
  %308 = vmatprep.mubr.bf16.mxu0 0
  %309 = vmatmul.mubr.bf16.gmra.mxu0 %v156
  %v310 = vpop.f32.mrf.mxu0
  %v311 = vadd.f32 0.0, %v310
  %v312 = vpop.f32.mrf.mxu0
  %v313 = vpop.f32.mrf.mxu0
  %v314 = vadd.f32 0.0, %v313
  %v315 = vpop.f32.mrf.mxu0
  %316 = vmatprep.mubr.bf16.mxu0 0
  %317 = vmatmul.mubr.bf16.gmra.mxu0 %v159
  %v318 = vpop.f32.mrf.mxu0
  %v319 = vadd.f32 0.0, %v318
  %v320 = vpop.f32.mrf.mxu0
  %v321 = vpop.f32.mrf.mxu0
  %v322 = vadd.f32 0.0, %v321
  %v323 = vpop.f32.mrf.mxu0
  %324 = vmatprep.mubr.bf16.mxu0 0
  %325 = vmatmul.mubr.bf16.gmra.mxu0 %v162
  %v326 = vpop.f32.mrf.mxu0
  %v327 = vadd.f32 0.0, %v326
  %v328 = vpop.f32.mrf.mxu0
  %v329 = vpop.f32.mrf.mxu0
  %v330 = vadd.f32 0.0, %v329
  %v331 = vpop.f32.mrf.mxu0
  %332 = vmatprep.mubr.bf16.mxu0 0
  %333 = vmatmul.mubr.bf16.gmra.mxu0 %v165
  %v334 = vpop.f32.mrf.mxu0
  %v335 = vadd.f32 0.0, %v334
  %v336 = vpop.f32.mrf.mxu0
  %v337 = vpop.f32.mrf.mxu0
  %v338 = vadd.f32 0.0, %v337
  %v339 = vpop.f32.mrf.mxu0
  %340 = vmatprep.mubr.bf16.mxu0 0
  %341 = vmatmul.mubr.bf16.gmra.mxu0 %v168
  %v342 = vpop.f32.mrf.mxu0
  %v343 = vadd.f32 0.0, %v342
  %v344 = vpop.f32.mrf.mxu0
  %v345 = vpop.f32.mrf.mxu0
  %v346 = vadd.f32 0.0, %v345
  %v347 = vpop.f32.mrf.mxu0
  %348 = vmatprep.mubr.bf16.mxu0 0
  %349 = vmatmul.mubr.bf16.gmra.mxu0 %v171
  %v350 = vpop.f32.mrf.mxu0
  %v351 = vadd.f32 0.0, %v350
  %v352 = vpop.f32.mrf.mxu0
  %v353 = vpop.f32.mrf.mxu0
  %v354 = vadd.f32 0.0, %v353
  %v355 = vpop.f32.mrf.mxu0
  %356 = vmatprep.mubr.bf16.mxu0 0
  %357 = vmatmul.mubr.bf16.gmra.mxu0 %v174
  %v358 = vpop.f32.mrf.mxu0
  %v359 = vadd.f32 0.0, %v358
  %v360 = vpop.f32.mrf.mxu0
  %v361 = vpop.f32.mrf.mxu0
  %v362 = vadd.f32 0.0, %v361
  %v363 = vpop.f32.mrf.mxu0
  %364 = vmatprep.mubr.bf16.mxu0 0
  %365 = vmatmul.mubr.bf16.gmra.mxu0 %v177
  %v366 = vpop.f32.mrf.mxu0
  %v367 = vadd.f32 0.0, %v366
  %v368 = vpop.f32.mrf.mxu0
  %v369 = vpop.f32.mrf.mxu0
  %v370 = vadd.f32 0.0, %v369
  %v371 = vpop.f32.mrf.mxu0
  %372 = vmatprep.mubr.bf16.mxu0 0
  %373 = vmatmul.mubr.bf16.gmra.mxu0 %v180
  %v374 = vpop.f32.mrf.mxu0
  %v375 = vadd.f32 0.0, %v374
  %v376 = vpop.f32.mrf.mxu0
  %v377 = vpop.f32.mrf.mxu0
  %v378 = vadd.f32 0.0, %v377
  %v379 = vpop.f32.mrf.mxu0
  %380 = vmatprep.mubr.bf16.mxu0 0
  %381 = vmatmul.mubr.bf16.gmra.mxu0 %v183
  %v382 = vpop.f32.mrf.mxu0
  %v383 = vadd.f32 0.0, %v382
  %v384 = vpop.f32.mrf.mxu0
  %v385 = vpop.f32.mrf.mxu0
  %v386 = vadd.f32 0.0, %v385
  %v387 = vpop.f32.mrf.mxu0
  %388 = vmatprep.mubr.bf16.mxu0 0
  %389 = vmatmul.mubr.bf16.gmra.mxu0 %v186
  %v390 = vpop.f32.mrf.mxu0
  %v391 = vadd.f32 0.0, %v390
  %v392 = vpop.f32.mrf.mxu0
  %v393 = vpop.f32.mrf.mxu0
  %v394 = vadd.f32 0.0, %v393
  %v395 = vpop.f32.mrf.mxu0
  %396 = vmatprep.mubr.bf16.mxu0 0
  %397 = vmatmul.mubr.bf16.gmra.mxu0 %v189
  %v398 = vpop.f32.mrf.mxu0
  %v399 = vadd.f32 0.0, %v398
  %v400 = vpop.f32.mrf.mxu0
  %v401 = vpop.f32.mrf.mxu0
  %v402 = vadd.f32 0.0, %v401
  %v403 = vpop.f32.mrf.mxu0
  %404 = vmatprep.mubr.bf16.mxu0 0
  %405 = vmatmul.mubr.bf16.gmra.mxu0 %v192
  %v406 = vpop.f32.mrf.mxu0
  %v407 = vadd.f32 0.0, %v406
  %v408 = vpop.f32.mrf.mxu0
  %v409 = vpop.f32.mrf.mxu0
  %v410 = vadd.f32 0.0, %v409
  %v411 = vpop.f32.mrf.mxu0
  %412 = vmatprep.mubr.bf16.mxu0 0
  %413 = vmatmul.mubr.bf16.gmra.mxu0 %v195
  %v414 = vpop.f32.mrf.mxu0
  %v415 = vadd.f32 0.0, %v414
  %v416 = vpop.f32.mrf.mxu0
  %v417 = vpop.f32.mrf.mxu0
  %v418 = vadd.f32 0.0, %v417
  %v419 = vpop.f32.mrf.mxu0
  %420 = vmatprep.mubr.bf16.mxu0 0
  %421 = vmatmul.mubr.bf16.gmra.mxu0 %v198
  %v422 = vpop.f32.mrf.mxu0
  %v423 = vadd.f32 0.0, %v422
  %v424 = vpop.f32.mrf.mxu0
  %v425 = vpop.f32.mrf.mxu0
  %v426 = vadd.f32 0.0, %v425
  %v427 = vpop.f32.mrf.mxu0
  %428 = vmatprep.mubr.bf16.mxu0 0
  %429 = vmatmul.mubr.bf16.gmra.mxu0 %v201
  %v430 = vpop.f32.mrf.mxu0
  %v431 = vadd.f32 0.0, %v430
  %v432 = vpop.f32.mrf.mxu0
  %v433 = vpop.f32.mrf.mxu0
  %v434 = vadd.f32 0.0, %v433
  %v435 = vpop.f32.mrf.mxu0
  %436 = vmatprep.mubr.bf16.mxu0 0
  %437 = vmatmul.mubr.bf16.gmra.mxu0 %v204
  %v438 = vpop.f32.mrf.mxu0
  %v439 = vadd.f32 0.0, %v438
  %v440 = vpop.f32.mrf.mxu0
  %v441 = vpop.f32.mrf.mxu0
  %v442 = vadd.f32 0.0, %v441
  %v443 = vpop.f32.mrf.mxu0
  %444 = vmatprep.mubr.bf16.mxu0 0
  %445 = vmatmul.mubr.bf16.gmra.mxu0 %v207
  %v446 = vpop.f32.mrf.mxu0
  %v447 = vadd.f32 0.0, %v446
  %v448 = vpop.f32.mrf.mxu0
  %v449 = vpop.f32.mrf.mxu0
  %v450 = vadd.f32 0.0, %v449
  %v451 = vpop.f32.mrf.mxu0
  %452 = vmatprep.mubr.bf16.mxu0 0
  %453 = vmatmul.mubr.bf16.gmra.mxu0 %v210
  %v454 = vpop.f32.mrf.mxu0
  %v455 = vadd.f32 0.0, %v454
  %v456 = vpop.f32.mrf.mxu0
  %v457 = vpop.f32.mrf.mxu0
  %v458 = vadd.f32 0.0, %v457
  %v459 = vpop.f32.mrf.mxu0
  %460 = vmatprep.mubr.bf16.mxu0 0
  %461 = vmatmul.mubr.bf16.gmra.mxu0 %v213
  %v462 = vpop.f32.mrf.mxu0
  %v463 = vadd.f32 0.0, %v462
  %v464 = vpop.f32.mrf.mxu0
  %v465 = vpop.f32.mrf.mxu0
  %v466 = vadd.f32 0.0, %v465
  %v467 = vpop.f32.mrf.mxu0
  %468 = vmatprep.mubr.bf16.mxu0 0
  %469 = vmatmul.mubr.bf16.gmra.mxu0 %v216
  %v470 = vpop.f32.mrf.mxu0
  %v471 = vadd.f32 0.0, %v470
  %v472 = vpop.f32.mrf.mxu0
  %v473 = vpop.f32.mrf.mxu0
  %v474 = vadd.f32 0.0, %v473
  %v475 = vpop.f32.mrf.mxu0
  %476 = vmatprep.mubr.bf16.mxu0 0
  %477 = vmatmul.mubr.bf16.gmra.mxu0 %v219
  %v478 = vpop.f32.mrf.mxu0
  %v479 = vadd.f32 0.0, %v478
  %v480 = vpop.f32.mrf.mxu0
  %v481 = vpop.f32.mrf.mxu0
  %v482 = vadd.f32 0.0, %v481
  %v483 = vpop.f32.mrf.mxu0
  %484 = vmatprep.mubr.bf16.mxu0 0
  %485 = vmatmul.mubr.bf16.gmra.mxu0 %v222
  %v486 = vpop.f32.mrf.mxu0
  %v487 = vadd.f32 0.0, %v486
  %v488 = vpop.f32.mrf.mxu0
  %v489 = vpop.f32.mrf.mxu0
  %v490 = vadd.f32 0.0, %v489
  %v491 = vpop.f32.mrf.mxu0
  %492 = vmatprep.mubr.bf16.mxu0 0
  %493 = vmatmul.mubr.bf16.gmra.mxu0 %v225
  %v494 = vpop.f32.mrf.mxu0
  %v495 = vadd.f32 0.0, %v494
  %v496 = vpop.f32.mrf.mxu0
  %v497 = vpop.f32.mrf.mxu0
  %v498 = vadd.f32 0.0, %v497
  %v499 = vpop.f32.mrf.mxu0
  %500 = vmatprep.mubr.bf16.mxu0 0
  %501 = vmatmul.mubr.bf16.gmra.mxu0 %v228
  %v502 = vpop.f32.mrf.mxu0
  %v503 = vadd.f32 0.0, %v502
  %v504 = vpop.f32.mrf.mxu0
  %v505 = vpop.f32.mrf.mxu0
  %v506 = vadd.f32 0.0, %v505
  %v507 = vpop.f32.mrf.mxu0
  %508 = vmatprep.mubr.bf16.mxu0 0
  %509 = vmatmul.mubr.bf16.gmra.mxu0 %v231
  %v510 = vpop.f32.mrf.mxu0
  %v511 = vadd.f32 0.0, %v510
  %v512 = vpop.f32.mrf.mxu0
  %v513 = vpop.f32.mrf.mxu0
  %v514 = vadd.f32 0.0, %v513
  %v515 = vpop.f32.mrf.mxu0
  %516 = vmatprep.mubr.bf16.mxu0 0
  %517 = vmatmul.mubr.bf16.gmra.mxu0 %v234
  %v518 = vpop.f32.mrf.mxu0
  %v519 = vadd.f32 0.0, %v518
  %v520 = vpop.f32.mrf.mxu0
  %v521 = vpop.f32.mrf.mxu0
  %v522 = vadd.f32 0.0, %v521
  %v523 = vpop.f32.mrf.mxu0
  %524 = vdwg.mxu0
  %v525 = vld [vmem:[%s2] sm:$0x1]
  %v526 = vlaneseq
  %v527 = vshrl.u32 %v526, 7
  %v528 = vsub.s32 0, %v527
  %v529 = vrot.slane %v525, %v528
  %v530 = vmul.f32 %v271, %v529
  %v531 = vmul.f32 %v274, %v529
  %v532 = vmul.f32 %v279, %v529
  %v533 = vmul.f32 %v282, %v529
  %v534 = vmul.f32 %v287, %v529
  %v535 = vmul.f32 %v290, %v529
  %v536 = vmul.f32 %v295, %v529
  %v537 = vmul.f32 %v298, %v529
  %v538 = vmul.f32 %v303, %v529
  %v539 = vmul.f32 %v306, %v529
  %v540 = vmul.f32 %v311, %v529
  %v541 = vmul.f32 %v314, %v529
  %v542 = vmul.f32 %v319, %v529
  %v543 = vmul.f32 %v322, %v529
  %v544 = vmul.f32 %v327, %v529
  %v545 = vmul.f32 %v330, %v529
  %v546 = vmul.f32 %v335, %v529
  %v547 = vmul.f32 %v338, %v529
  %v548 = vmul.f32 %v343, %v529
  %v549 = vmul.f32 %v346, %v529
  %v550 = vmul.f32 %v351, %v529
  %v551 = vmul.f32 %v354, %v529
  %v552 = vmul.f32 %v359, %v529
  %v553 = vmul.f32 %v362, %v529
  %v554 = vmul.f32 %v367, %v529
  %v555 = vmul.f32 %v370, %v529
  %v556 = vmul.f32 %v375, %v529
  %v557 = vmul.f32 %v378, %v529
  %v558 = vmul.f32 %v383, %v529
  %v559 = vmul.f32 %v386, %v529
  %v560 = vmul.f32 %v391, %v529
  %v561 = vmul.f32 %v394, %v529
  %v562 = vmul.f32 %v399, %v529
  %v563 = vmul.f32 %v402, %v529
  %v564 = vmul.f32 %v407, %v529
  %v565 = vmul.f32 %v410, %v529
  %v566 = vmul.f32 %v415, %v529
  %v567 = vmul.f32 %v418, %v529
  %v568 = vmul.f32 %v423, %v529
  %v569 = vmul.f32 %v426, %v529
  %v570 = vmul.f32 %v431, %v529
  %v571 = vmul.f32 %v434, %v529
  %v572 = vmul.f32 %v439, %v529
  %v573 = vmul.f32 %v442, %v529
  %v574 = vmul.f32 %v447, %v529
  %v575 = vmul.f32 %v450, %v529
  %v576 = vmul.f32 %v455, %v529
  %v577 = vmul.f32 %v458, %v529
  %v578 = vmul.f32 %v463, %v529
  %v579 = vmul.f32 %v466, %v529
  %v580 = vmul.f32 %v471, %v529
  %v581 = vmul.f32 %v474, %v529
  %v582 = vmul.f32 %v479, %v529
  %v583 = vmul.f32 %v482, %v529
  %v584 = vmul.f32 %v487, %v529
  %v585 = vmul.f32 %v490, %v529
  %v586 = vmul.f32 %v495, %v529
  %v587 = vmul.f32 %v498, %v529
  %v588 = vmul.f32 %v503, %v529
  %v589 = vmul.f32 %v506, %v529
  %v590 = vmul.f32 %v511, %v529
  %v591 = vmul.f32 %v514, %v529
  %v592 = vmul.f32 %v519, %v529
  %v593 = vmul.f32 %v522, %v529
  %v594 = vld [vmem:[%s2 + $0x1] sm:$0x1]
  %v595 = vlaneseq
  %v596 = vshrl.u32 %v595, 7
  %v597 = vsub.s32 0, %v596
  %v598 = vrot.slane %v594, %v597
  %v599 = vadd.f32 %v530, %v598
  %v600 = vadd.f32 %v531, %v598
  %v601 = vadd.f32 %v532, %v598
  %v602 = vadd.f32 %v533, %v598
  %v603 = vadd.f32 %v534, %v598
  %v604 = vadd.f32 %v535, %v598
  %v605 = vadd.f32 %v536, %v598
  %v606 = vadd.f32 %v537, %v598
  %v607 = vadd.f32 %v538, %v598
  %v608 = vadd.f32 %v539, %v598
  %v609 = vadd.f32 %v540, %v598
  %v610 = vadd.f32 %v541, %v598
  %v611 = vadd.f32 %v542, %v598
  %v612 = vadd.f32 %v543, %v598
  %v613 = vadd.f32 %v544, %v598
  %v614 = vadd.f32 %v545, %v598
  %v615 = vadd.f32 %v546, %v598
  %v616 = vadd.f32 %v547, %v598
  %v617 = vadd.f32 %v548, %v598
  %v618 = vadd.f32 %v549, %v598
  %v619 = vadd.f32 %v550, %v598
  %v620 = vadd.f32 %v551, %v598
  %v621 = vadd.f32 %v552, %v598
  %v622 = vadd.f32 %v553, %v598
  %v623 = vadd.f32 %v554, %v598
  %v624 = vadd.f32 %v555, %v598
  %v625 = vadd.f32 %v556, %v598
  %v626 = vadd.f32 %v557, %v598
  %v627 = vadd.f32 %v558, %v598
  %v628 = vadd.f32 %v559, %v598
  %v629 = vadd.f32 %v560, %v598
  %v630 = vadd.f32 %v561, %v598
  %v631 = vadd.f32 %v562, %v598
  %v632 = vadd.f32 %v563, %v598
  %v633 = vadd.f32 %v564, %v598
  %v634 = vadd.f32 %v565, %v598
  %v635 = vadd.f32 %v566, %v598
  %v636 = vadd.f32 %v567, %v598
  %v637 = vadd.f32 %v568, %v598
  %v638 = vadd.f32 %v569, %v598
  %v639 = vadd.f32 %v570, %v598
  %v640 = vadd.f32 %v571, %v598
  %v641 = vadd.f32 %v572, %v598
  %v642 = vadd.f32 %v573, %v598
  %v643 = vadd.f32 %v574, %v598
  %v644 = vadd.f32 %v575, %v598
  %v645 = vadd.f32 %v576, %v598
  %v646 = vadd.f32 %v577, %v598
  %v647 = vadd.f32 %v578, %v598
  %v648 = vadd.f32 %v579, %v598
  %v649 = vadd.f32 %v580, %v598
  %v650 = vadd.f32 %v581, %v598
  %v651 = vadd.f32 %v582, %v598
  %v652 = vadd.f32 %v583, %v598
  %v653 = vadd.f32 %v584, %v598
  %v654 = vadd.f32 %v585, %v598
  %v655 = vadd.f32 %v586, %v598
  %v656 = vadd.f32 %v587, %v598
  %v657 = vadd.f32 %v588, %v598
  %v658 = vadd.f32 %v589, %v598
  %v659 = vadd.f32 %v590, %v598
  %v660 = vadd.f32 %v591, %v598
  %v661 = vadd.f32 %v592, %v598
  %v662 = vadd.f32 %v593, %v598
  %v663 = vmax.f32 %v599, 0.0
  %v664 = vmax.f32 %v600, 0.0
  %v665 = vmax.f32 %v601, 0.0
  %v666 = vmax.f32 %v602, 0.0
  %v667 = vmax.f32 %v603, 0.0
  %v668 = vmax.f32 %v604, 0.0
  %v669 = vmax.f32 %v605, 0.0
  %v670 = vmax.f32 %v606, 0.0
  %v671 = vmax.f32 %v607, 0.0
  %v672 = vmax.f32 %v608, 0.0
  %v673 = vmax.f32 %v609, 0.0
  %v674 = vmax.f32 %v610, 0.0
  %v675 = vmax.f32 %v611, 0.0
  %v676 = vmax.f32 %v612, 0.0
  %v677 = vmax.f32 %v613, 0.0
  %v678 = vmax.f32 %v614, 0.0
  %v679 = vmax.f32 %v615, 0.0
  %v680 = vmax.f32 %v616, 0.0
  %v681 = vmax.f32 %v617, 0.0
  %v682 = vmax.f32 %v618, 0.0
  %v683 = vmax.f32 %v619, 0.0
  %v684 = vmax.f32 %v620, 0.0
  %v685 = vmax.f32 %v621, 0.0
  %v686 = vmax.f32 %v622, 0.0
  %v687 = vmax.f32 %v623, 0.0
  %v688 = vmax.f32 %v624, 0.0
  %v689 = vmax.f32 %v625, 0.0
  %v690 = vmax.f32 %v626, 0.0
  %v691 = vmax.f32 %v627, 0.0
  %v692 = vmax.f32 %v628, 0.0
  %v693 = vmax.f32 %v629, 0.0
  %v694 = vmax.f32 %v630, 0.0
  %v695 = vmax.f32 %v631, 0.0
  %v696 = vmax.f32 %v632, 0.0
  %v697 = vmax.f32 %v633, 0.0
  %v698 = vmax.f32 %v634, 0.0
  %v699 = vmax.f32 %v635, 0.0
  %v700 = vmax.f32 %v636, 0.0
  %v701 = vmax.f32 %v637, 0.0
  %v702 = vmax.f32 %v638, 0.0
  %v703 = vmax.f32 %v639, 0.0
  %v704 = vmax.f32 %v640, 0.0
  %v705 = vmax.f32 %v641, 0.0
  %v706 = vmax.f32 %v642, 0.0
  %v707 = vmax.f32 %v643, 0.0
  %v708 = vmax.f32 %v644, 0.0
  %v709 = vmax.f32 %v645, 0.0
  %v710 = vmax.f32 %v646, 0.0
  %v711 = vmax.f32 %v647, 0.0
  %v712 = vmax.f32 %v648, 0.0
  %v713 = vmax.f32 %v649, 0.0
  %v714 = vmax.f32 %v650, 0.0
  %v715 = vmax.f32 %v651, 0.0
  %v716 = vmax.f32 %v652, 0.0
  %v717 = vmax.f32 %v653, 0.0
  %v718 = vmax.f32 %v654, 0.0
  %v719 = vmax.f32 %v655, 0.0
  %v720 = vmax.f32 %v656, 0.0
  %v721 = vmax.f32 %v657, 0.0
  %v722 = vmax.f32 %v658, 0.0
  %v723 = vmax.f32 %v659, 0.0
  %v724 = vmax.f32 %v660, 0.0
  %v725 = vmax.f32 %v661, 0.0
  %v726 = vmax.f32 %v662, 0.0
  %v727 = vpack.c.bf16 %v664, %v663
  %v728 = vpack.c.bf16 %v666, %v665
  %v729 = vpack.c.bf16 %v668, %v667
  %v730 = vpack.c.bf16 %v670, %v669
  %v731 = vpack.c.bf16 %v672, %v671
  %v732 = vpack.c.bf16 %v674, %v673
  %v733 = vpack.c.bf16 %v676, %v675
  %v734 = vpack.c.bf16 %v678, %v677
  %v735 = vpack.c.bf16 %v680, %v679
  %v736 = vpack.c.bf16 %v682, %v681
  %v737 = vpack.c.bf16 %v684, %v683
  %v738 = vpack.c.bf16 %v686, %v685
  %v739 = vpack.c.bf16 %v688, %v687
  %v740 = vpack.c.bf16 %v690, %v689
  %v741 = vpack.c.bf16 %v692, %v691
  %v742 = vpack.c.bf16 %v694, %v693
  %v743 = vpack.c.bf16 %v696, %v695
  %v744 = vpack.c.bf16 %v698, %v697
  %v745 = vpack.c.bf16 %v700, %v699
  %v746 = vpack.c.bf16 %v702, %v701
  %v747 = vpack.c.bf16 %v704, %v703
  %v748 = vpack.c.bf16 %v706, %v705
  %v749 = vpack.c.bf16 %v708, %v707
  %v750 = vpack.c.bf16 %v710, %v709
  %v751 = vpack.c.bf16 %v712, %v711
  %v752 = vpack.c.bf16 %v714, %v713
  %v753 = vpack.c.bf16 %v716, %v715
  %v754 = vpack.c.bf16 %v718, %v717
  %v755 = vpack.c.bf16 %v720, %v719
  %v756 = vpack.c.bf16 %v722, %v721
  %v757 = vpack.c.bf16 %v724, %v723
  %v758 = vpack.c.bf16 %v726, %v725
  %v759 = vld [vmem:[%s3] sm:$0xf]
  %v760 = vld [vmem:[%s3 + $0x4] sm:$0xf]
  %v761 = vld [vmem:[%s3 + $0x8] sm:$0xf]
  %v762 = vld [vmem:[%s3 + $0xc] sm:$0xf]
  %v763 = vld [vmem:[%s3 + $0x10] sm:$0xf]
  %v764 = vld [vmem:[%s3 + $0x14] sm:$0xf]
  %v765 = vld [vmem:[%s3 + $0x18] sm:$0xf]
  %v766 = vld [vmem:[%s3 + $0x1c] sm:$0xf]
  %v767 = vld [vmem:[%s3 + $0x20] sm:$0xf]
  %v768 = vld [vmem:[%s3 + $0x24] sm:$0xf]
  %v769 = vld [vmem:[%s3 + $0x28] sm:$0xf]
  %v770 = vld [vmem:[%s3 + $0x2c] sm:$0xf]
  %v771 = vld [vmem:[%s3 + $0x30] sm:$0xf]
  %v772 = vld [vmem:[%s3 + $0x34] sm:$0xf]
  %v773 = vld [vmem:[%s3 + $0x38] sm:$0xf]
  %v774 = vld [vmem:[%s3 + $0x3c] sm:$0xf]
  %v791 = vunpack.c.l.b16 %v759
  %v792 = vunpack.c.l.b16 %v760
  %v793 = vunpack.c.l.b16 %v761
  %v794 = vunpack.c.l.b16 %v762
  %v795 = vunpack.c.l.b16 %v763
  %v796 = vunpack.c.l.b16 %v764
  %v797 = vunpack.c.l.b16 %v765
  %v798 = vunpack.c.l.b16 %v766
  %v799 = vunpack.c.l.b16 %v767
  %v800 = vunpack.c.l.b16 %v768
  %v801 = vunpack.c.l.b16 %v769
  %v802 = vunpack.c.l.b16 %v770
  %v803 = vunpack.c.l.b16 %v771
  %v804 = vunpack.c.l.b16 %v772
  %v805 = vunpack.c.l.b16 %v773
  %v806 = vunpack.c.l.b16 %v774
  %v807 = vpack.c.b16 %v792, %v791
  %v808 = vpack.c.b16 %v794, %v793
  %v809 = vpack.c.b16 %v796, %v795
  %v810 = vpack.c.b16 %v798, %v797
  %v811 = vpack.c.b16 %v800, %v799
  %v812 = vpack.c.b16 %v802, %v801
  %v813 = vpack.c.b16 %v804, %v803
  %v814 = vpack.c.b16 %v806, %v805
  %823 = vmatprep.subr.bf16.mxu0 0
  %824 = vmatpush1.bf16.msra.mxu0 %v814
  %825 = vmatprep.subr.bf16.mxu0 0
  %826 = vmatpush1.bf16.msra.mxu0 %v813
  %827 = vmatprep.subr.bf16.mxu0 0
  %828 = vmatpush1.bf16.msra.mxu0 %v812
  %829 = vmatprep.subr.bf16.mxu0 0
  %830 = vmatpush1.bf16.msra.mxu0 %v811
  %831 = vmatprep.subr.bf16.mxu0 0
  %832 = vmatpush1.bf16.msra.mxu0 %v810
  %833 = vmatprep.subr.bf16.mxu0 0
  %834 = vmatpush1.bf16.msra.mxu0 %v809
  %835 = vmatprep.subr.bf16.mxu0 0
  %836 = vmatpush1.bf16.msra.mxu0 %v808
  %837 = vmatprep.subr.bf16.mxu0 0
  %838 = vmatpush1.bf16.msra.mxu0 %v807
  %839 = vmatprep.subr.bf16.mxu0 0
  %840 = vmatpush2.bf16.msra.mxu0 0
  %841 = vmatprep.subr.bf16.mxu0 0
  %842 = vmatpush2.bf16.msra.mxu0 0
  %843 = vmatprep.subr.bf16.mxu0 0
  %844 = vmatpush2.bf16.msra.mxu0 0
  %845 = vmatprep.subr.bf16.mxu0 0
  %846 = vmatpush2.bf16.msra.mxu0 0
  %847 = vmatprep.subr.bf16.mxu0 0
  %848 = vmatpush2.bf16.msra.mxu0 0
  %849 = vmatprep.subr.bf16.mxu0 0
  %850 = vmatpush2.bf16.msra.mxu0 0
  %851 = vmatprep.subr.bf16.mxu0 0
  %852 = vmatpush2.bf16.msra.mxu0 0
  %853 = vmatprep.subr.bf16.mxu0 0
  %854 = vmatpush2.bf16.msra.mxu0 0
  %855 = vmatprep.mubr.bf16.mxu0 0
  %856 = vmatmul.mubr.bf16.gmra.mxu0 %v727
  %v857 = vpop.f32.mrf.mxu0
  %v858 = vadd.f32 0.0, %v857
  %v859 = vpop.f32.mrf.mxu0
  %v860 = vpop.f32.mrf.mxu0
  %v861 = vadd.f32 0.0, %v860
  %v862 = vpop.f32.mrf.mxu0
  %863 = vmatprep.mubr.bf16.mxu0 0
  %864 = vmatmul.mubr.bf16.gmra.mxu0 %v728
  %v865 = vpop.f32.mrf.mxu0
  %v866 = vadd.f32 0.0, %v865
  %v867 = vpop.f32.mrf.mxu0
  %v868 = vpop.f32.mrf.mxu0
  %v869 = vadd.f32 0.0, %v868
  %v870 = vpop.f32.mrf.mxu0
  %871 = vmatprep.mubr.bf16.mxu0 0
  %872 = vmatmul.mubr.bf16.gmra.mxu0 %v729
  %v873 = vpop.f32.mrf.mxu0
  %v874 = vadd.f32 0.0, %v873
  %v875 = vpop.f32.mrf.mxu0
  %v876 = vpop.f32.mrf.mxu0
  %v877 = vadd.f32 0.0, %v876
  %v878 = vpop.f32.mrf.mxu0
  %879 = vmatprep.mubr.bf16.mxu0 0
  %880 = vmatmul.mubr.bf16.gmra.mxu0 %v730
  %v881 = vpop.f32.mrf.mxu0
  %v882 = vadd.f32 0.0, %v881
  %v883 = vpop.f32.mrf.mxu0
  %v884 = vpop.f32.mrf.mxu0
  %v885 = vadd.f32 0.0, %v884
  %v886 = vpop.f32.mrf.mxu0
  %887 = vmatprep.mubr.bf16.mxu0 0
  %888 = vmatmul.mubr.bf16.gmra.mxu0 %v731
  %v889 = vpop.f32.mrf.mxu0
  %v890 = vadd.f32 0.0, %v889
  %v891 = vpop.f32.mrf.mxu0
  %v892 = vpop.f32.mrf.mxu0
  %v893 = vadd.f32 0.0, %v892
  %v894 = vpop.f32.mrf.mxu0
  %895 = vmatprep.mubr.bf16.mxu0 0
  %896 = vmatmul.mubr.bf16.gmra.mxu0 %v732
  %v897 = vpop.f32.mrf.mxu0
  %v898 = vadd.f32 0.0, %v897
  %v899 = vpop.f32.mrf.mxu0
  %v900 = vpop.f32.mrf.mxu0
  %v901 = vadd.f32 0.0, %v900
  %v902 = vpop.f32.mrf.mxu0
  %903 = vmatprep.mubr.bf16.mxu0 0
  %904 = vmatmul.mubr.bf16.gmra.mxu0 %v733
  %v905 = vpop.f32.mrf.mxu0
  %v906 = vadd.f32 0.0, %v905
  %v907 = vpop.f32.mrf.mxu0
  %v908 = vpop.f32.mrf.mxu0
  %v909 = vadd.f32 0.0, %v908
  %v910 = vpop.f32.mrf.mxu0
  %911 = vmatprep.mubr.bf16.mxu0 0
  %912 = vmatmul.mubr.bf16.gmra.mxu0 %v734
  %v913 = vpop.f32.mrf.mxu0
  %v914 = vadd.f32 0.0, %v913
  %v915 = vpop.f32.mrf.mxu0
  %v916 = vpop.f32.mrf.mxu0
  %v917 = vadd.f32 0.0, %v916
  %v918 = vpop.f32.mrf.mxu0
  %919 = vmatprep.mubr.bf16.mxu0 0
  %920 = vmatmul.mubr.bf16.gmra.mxu0 %v735
  %v921 = vpop.f32.mrf.mxu0
  %v922 = vadd.f32 0.0, %v921
  %v923 = vpop.f32.mrf.mxu0
  %v924 = vpop.f32.mrf.mxu0
  %v925 = vadd.f32 0.0, %v924
  %v926 = vpop.f32.mrf.mxu0
  %927 = vmatprep.mubr.bf16.mxu0 0
  %928 = vmatmul.mubr.bf16.gmra.mxu0 %v736
  %v929 = vpop.f32.mrf.mxu0
  %v930 = vadd.f32 0.0, %v929
  %v931 = vpop.f32.mrf.mxu0
  %v932 = vpop.f32.mrf.mxu0
  %v933 = vadd.f32 0.0, %v932
  %v934 = vpop.f32.mrf.mxu0
  %935 = vmatprep.mubr.bf16.mxu0 0
  %936 = vmatmul.mubr.bf16.gmra.mxu0 %v737
  %v937 = vpop.f32.mrf.mxu0
  %v938 = vadd.f32 0.0, %v937
  %v939 = vpop.f32.mrf.mxu0
  %v940 = vpop.f32.mrf.mxu0
  %v941 = vadd.f32 0.0, %v940
  %v942 = vpop.f32.mrf.mxu0
  %943 = vmatprep.mubr.bf16.mxu0 0
  %944 = vmatmul.mubr.bf16.gmra.mxu0 %v738
  %v945 = vpop.f32.mrf.mxu0
  %v946 = vadd.f32 0.0, %v945
  %v947 = vpop.f32.mrf.mxu0
  %v948 = vpop.f32.mrf.mxu0
  %v949 = vadd.f32 0.0, %v948
  %v950 = vpop.f32.mrf.mxu0
  %951 = vmatprep.mubr.bf16.mxu0 0
  %952 = vmatmul.mubr.bf16.gmra.mxu0 %v739
  %v953 = vpop.f32.mrf.mxu0
  %v954 = vadd.f32 0.0, %v953
  %v955 = vpop.f32.mrf.mxu0
  %v956 = vpop.f32.mrf.mxu0
  %v957 = vadd.f32 0.0, %v956
  %v958 = vpop.f32.mrf.mxu0
  %959 = vmatprep.mubr.bf16.mxu0 0
  %960 = vmatmul.mubr.bf16.gmra.mxu0 %v740
  %v961 = vpop.f32.mrf.mxu0
  %v962 = vadd.f32 0.0, %v961
  %v963 = vpop.f32.mrf.mxu0
  %v964 = vpop.f32.mrf.mxu0
  %v965 = vadd.f32 0.0, %v964
  %v966 = vpop.f32.mrf.mxu0
  %967 = vmatprep.mubr.bf16.mxu0 0
  %968 = vmatmul.mubr.bf16.gmra.mxu0 %v741
  %v969 = vpop.f32.mrf.mxu0
  %v970 = vadd.f32 0.0, %v969
  %v971 = vpop.f32.mrf.mxu0
  %v972 = vpop.f32.mrf.mxu0
  %v973 = vadd.f32 0.0, %v972
  %v974 = vpop.f32.mrf.mxu0
  %975 = vmatprep.mubr.bf16.mxu0 0
  %976 = vmatmul.mubr.bf16.gmra.mxu0 %v742
  %v977 = vpop.f32.mrf.mxu0
  %v978 = vadd.f32 0.0, %v977
  %v979 = vpop.f32.mrf.mxu0
  %v980 = vpop.f32.mrf.mxu0
  %v981 = vadd.f32 0.0, %v980
  %v982 = vpop.f32.mrf.mxu0
  %983 = vmatprep.mubr.bf16.mxu0 0
  %984 = vmatmul.mubr.bf16.gmra.mxu0 %v743
  %v985 = vpop.f32.mrf.mxu0
  %v986 = vadd.f32 0.0, %v985
  %v987 = vpop.f32.mrf.mxu0
  %v988 = vpop.f32.mrf.mxu0
  %v989 = vadd.f32 0.0, %v988
  %v990 = vpop.f32.mrf.mxu0
  %991 = vmatprep.mubr.bf16.mxu0 0
  %992 = vmatmul.mubr.bf16.gmra.mxu0 %v744
  %v993 = vpop.f32.mrf.mxu0
  %v994 = vadd.f32 0.0, %v993
  %v995 = vpop.f32.mrf.mxu0
  %v996 = vpop.f32.mrf.mxu0
  %v997 = vadd.f32 0.0, %v996
  %v998 = vpop.f32.mrf.mxu0
  %999 = vmatprep.mubr.bf16.mxu0 0
  %1000 = vmatmul.mubr.bf16.gmra.mxu0 %v745
  %v1001 = vpop.f32.mrf.mxu0
  %v1002 = vadd.f32 0.0, %v1001
  %v1003 = vpop.f32.mrf.mxu0
  %v1004 = vpop.f32.mrf.mxu0
  %v1005 = vadd.f32 0.0, %v1004
  %v1006 = vpop.f32.mrf.mxu0
  %1007 = vmatprep.mubr.bf16.mxu0 0
  %1008 = vmatmul.mubr.bf16.gmra.mxu0 %v746
  %v1009 = vpop.f32.mrf.mxu0
  %v1010 = vadd.f32 0.0, %v1009
  %v1011 = vpop.f32.mrf.mxu0
  %v1012 = vpop.f32.mrf.mxu0
  %v1013 = vadd.f32 0.0, %v1012
  %v1014 = vpop.f32.mrf.mxu0
  %1015 = vmatprep.mubr.bf16.mxu0 0
  %1016 = vmatmul.mubr.bf16.gmra.mxu0 %v747
  %v1017 = vpop.f32.mrf.mxu0
  %v1018 = vadd.f32 0.0, %v1017
  %v1019 = vpop.f32.mrf.mxu0
  %v1020 = vpop.f32.mrf.mxu0
  %v1021 = vadd.f32 0.0, %v1020
  %v1022 = vpop.f32.mrf.mxu0
  %1023 = vmatprep.mubr.bf16.mxu0 0
  %1024 = vmatmul.mubr.bf16.gmra.mxu0 %v748
  %v1025 = vpop.f32.mrf.mxu0
  %v1026 = vadd.f32 0.0, %v1025
  %v1027 = vpop.f32.mrf.mxu0
  %v1028 = vpop.f32.mrf.mxu0
  %v1029 = vadd.f32 0.0, %v1028
  %v1030 = vpop.f32.mrf.mxu0
  %1031 = vmatprep.mubr.bf16.mxu0 0
  %1032 = vmatmul.mubr.bf16.gmra.mxu0 %v749
  %v1033 = vpop.f32.mrf.mxu0
  %v1034 = vadd.f32 0.0, %v1033
  %v1035 = vpop.f32.mrf.mxu0
  %v1036 = vpop.f32.mrf.mxu0
  %v1037 = vadd.f32 0.0, %v1036
  %v1038 = vpop.f32.mrf.mxu0
  %1039 = vmatprep.mubr.bf16.mxu0 0
  %1040 = vmatmul.mubr.bf16.gmra.mxu0 %v750
  %v1041 = vpop.f32.mrf.mxu0
  %v1042 = vadd.f32 0.0, %v1041
  %v1043 = vpop.f32.mrf.mxu0
  %v1044 = vpop.f32.mrf.mxu0
  %v1045 = vadd.f32 0.0, %v1044
  %v1046 = vpop.f32.mrf.mxu0
  %1047 = vmatprep.mubr.bf16.mxu0 0
  %1048 = vmatmul.mubr.bf16.gmra.mxu0 %v751
  %v1049 = vpop.f32.mrf.mxu0
  %v1050 = vadd.f32 0.0, %v1049
  %v1051 = vpop.f32.mrf.mxu0
  %v1052 = vpop.f32.mrf.mxu0
  %v1053 = vadd.f32 0.0, %v1052
  %v1054 = vpop.f32.mrf.mxu0
  %1055 = vmatprep.mubr.bf16.mxu0 0
  %1056 = vmatmul.mubr.bf16.gmra.mxu0 %v752
  %v1057 = vpop.f32.mrf.mxu0
  %v1058 = vadd.f32 0.0, %v1057
  %v1059 = vpop.f32.mrf.mxu0
  %v1060 = vpop.f32.mrf.mxu0
  %v1061 = vadd.f32 0.0, %v1060
  %v1062 = vpop.f32.mrf.mxu0
  %1063 = vmatprep.mubr.bf16.mxu0 0
  %1064 = vmatmul.mubr.bf16.gmra.mxu0 %v753
  %v1065 = vpop.f32.mrf.mxu0
  %v1066 = vadd.f32 0.0, %v1065
  %v1067 = vpop.f32.mrf.mxu0
  %v1068 = vpop.f32.mrf.mxu0
  %v1069 = vadd.f32 0.0, %v1068
  %v1070 = vpop.f32.mrf.mxu0
  %1071 = vmatprep.mubr.bf16.mxu0 0
  %1072 = vmatmul.mubr.bf16.gmra.mxu0 %v754
  %v1073 = vpop.f32.mrf.mxu0
  %v1074 = vadd.f32 0.0, %v1073
  %v1075 = vpop.f32.mrf.mxu0
  %v1076 = vpop.f32.mrf.mxu0
  %v1077 = vadd.f32 0.0, %v1076
  %v1078 = vpop.f32.mrf.mxu0
  %1079 = vmatprep.mubr.bf16.mxu0 0
  %1080 = vmatmul.mubr.bf16.gmra.mxu0 %v755
  %v1081 = vpop.f32.mrf.mxu0
  %v1082 = vadd.f32 0.0, %v1081
  %v1083 = vpop.f32.mrf.mxu0
  %v1084 = vpop.f32.mrf.mxu0
  %v1085 = vadd.f32 0.0, %v1084
  %v1086 = vpop.f32.mrf.mxu0
  %1087 = vmatprep.mubr.bf16.mxu0 0
  %1088 = vmatmul.mubr.bf16.gmra.mxu0 %v756
  %v1089 = vpop.f32.mrf.mxu0
  %v1090 = vadd.f32 0.0, %v1089
  %v1091 = vpop.f32.mrf.mxu0
  %v1092 = vpop.f32.mrf.mxu0
  %v1093 = vadd.f32 0.0, %v1092
  %v1094 = vpop.f32.mrf.mxu0
  %1095 = vmatprep.mubr.bf16.mxu0 0
  %1096 = vmatmul.mubr.bf16.gmra.mxu0 %v757
  %v1097 = vpop.f32.mrf.mxu0
  %v1098 = vadd.f32 0.0, %v1097
  %v1099 = vpop.f32.mrf.mxu0
  %v1100 = vpop.f32.mrf.mxu0
  %v1101 = vadd.f32 0.0, %v1100
  %v1102 = vpop.f32.mrf.mxu0
  %1103 = vmatprep.mubr.bf16.mxu0 0
  %1104 = vmatmul.mubr.bf16.gmra.mxu0 %v758
  %v1105 = vpop.f32.mrf.mxu0
  %v1106 = vadd.f32 0.0, %v1105
  %v1107 = vpop.f32.mrf.mxu0
  %v1108 = vpop.f32.mrf.mxu0
  %v1109 = vadd.f32 0.0, %v1108
  %v1110 = vpop.f32.mrf.mxu0
  %1111 = vdwg.mxu0
  %v1112 = vld [vmem:[%s4] sm:$0x1]
  %v1113 = vlaneseq
  %v1114 = vshrl.u32 %v1113, 7
  %v1115 = vsub.s32 0, %v1114
  %v1116 = vrot.slane %v1112, %v1115
  %v1117 = vmul.f32 %v858, %v1116
  %v1118 = vmul.f32 %v861, %v1116
  %v1119 = vmul.f32 %v866, %v1116
  %v1120 = vmul.f32 %v869, %v1116
  %v1121 = vmul.f32 %v874, %v1116
  %v1122 = vmul.f32 %v877, %v1116
  %v1123 = vmul.f32 %v882, %v1116
  %v1124 = vmul.f32 %v885, %v1116
  %v1125 = vmul.f32 %v890, %v1116
  %v1126 = vmul.f32 %v893, %v1116
  %v1127 = vmul.f32 %v898, %v1116
  %v1128 = vmul.f32 %v901, %v1116
  %v1129 = vmul.f32 %v906, %v1116
  %v1130 = vmul.f32 %v909, %v1116
  %v1131 = vmul.f32 %v914, %v1116
  %v1132 = vmul.f32 %v917, %v1116
  %v1133 = vmul.f32 %v922, %v1116
  %v1134 = vmul.f32 %v925, %v1116
  %v1135 = vmul.f32 %v930, %v1116
  %v1136 = vmul.f32 %v933, %v1116
  %v1137 = vmul.f32 %v938, %v1116
  %v1138 = vmul.f32 %v941, %v1116
  %v1139 = vmul.f32 %v946, %v1116
  %v1140 = vmul.f32 %v949, %v1116
  %v1141 = vmul.f32 %v954, %v1116
  %v1142 = vmul.f32 %v957, %v1116
  %v1143 = vmul.f32 %v962, %v1116
  %v1144 = vmul.f32 %v965, %v1116
  %v1145 = vmul.f32 %v970, %v1116
  %v1146 = vmul.f32 %v973, %v1116
  %v1147 = vmul.f32 %v978, %v1116
  %v1148 = vmul.f32 %v981, %v1116
  %v1149 = vmul.f32 %v986, %v1116
  %v1150 = vmul.f32 %v989, %v1116
  %v1151 = vmul.f32 %v994, %v1116
  %v1152 = vmul.f32 %v997, %v1116
  %v1153 = vmul.f32 %v1002, %v1116
  %v1154 = vmul.f32 %v1005, %v1116
  %v1155 = vmul.f32 %v1010, %v1116
  %v1156 = vmul.f32 %v1013, %v1116
  %v1157 = vmul.f32 %v1018, %v1116
  %v1158 = vmul.f32 %v1021, %v1116
  %v1159 = vmul.f32 %v1026, %v1116
  %v1160 = vmul.f32 %v1029, %v1116
  %v1161 = vmul.f32 %v1034, %v1116
  %v1162 = vmul.f32 %v1037, %v1116
  %v1163 = vmul.f32 %v1042, %v1116
  %v1164 = vmul.f32 %v1045, %v1116
  %v1165 = vmul.f32 %v1050, %v1116
  %v1166 = vmul.f32 %v1053, %v1116
  %v1167 = vmul.f32 %v1058, %v1116
  %v1168 = vmul.f32 %v1061, %v1116
  %v1169 = vmul.f32 %v1066, %v1116
  %v1170 = vmul.f32 %v1069, %v1116
  %v1171 = vmul.f32 %v1074, %v1116
  %v1172 = vmul.f32 %v1077, %v1116
  %v1173 = vmul.f32 %v1082, %v1116
  %v1174 = vmul.f32 %v1085, %v1116
  %v1175 = vmul.f32 %v1090, %v1116
  %v1176 = vmul.f32 %v1093, %v1116
  %v1177 = vmul.f32 %v1098, %v1116
  %v1178 = vmul.f32 %v1101, %v1116
  %v1179 = vmul.f32 %v1106, %v1116
  %v1180 = vmul.f32 %v1109, %v1116
  %v1181 = vld [vmem:[%s4 + $0x1] sm:$0x1]
  %v1182 = vlaneseq
  %v1183 = vshrl.u32 %v1182, 7
  %v1184 = vsub.s32 0, %v1183
  %v1185 = vrot.slane %v1181, %v1184
  %v1186 = vadd.f32 %v1117, %v1185
  %v1187 = vadd.f32 %v1118, %v1185
  %v1188 = vadd.f32 %v1119, %v1185
  %v1189 = vadd.f32 %v1120, %v1185
  %v1190 = vadd.f32 %v1121, %v1185
  %v1191 = vadd.f32 %v1122, %v1185
  %v1192 = vadd.f32 %v1123, %v1185
  %v1193 = vadd.f32 %v1124, %v1185
  %v1194 = vadd.f32 %v1125, %v1185
  %v1195 = vadd.f32 %v1126, %v1185
  %v1196 = vadd.f32 %v1127, %v1185
  %v1197 = vadd.f32 %v1128, %v1185
  %v1198 = vadd.f32 %v1129, %v1185
  %v1199 = vadd.f32 %v1130, %v1185
  %v1200 = vadd.f32 %v1131, %v1185
  %v1201 = vadd.f32 %v1132, %v1185
  %v1202 = vadd.f32 %v1133, %v1185
  %v1203 = vadd.f32 %v1134, %v1185
  %v1204 = vadd.f32 %v1135, %v1185
  %v1205 = vadd.f32 %v1136, %v1185
  %v1206 = vadd.f32 %v1137, %v1185
  %v1207 = vadd.f32 %v1138, %v1185
  %v1208 = vadd.f32 %v1139, %v1185
  %v1209 = vadd.f32 %v1140, %v1185
  %v1210 = vadd.f32 %v1141, %v1185
  %v1211 = vadd.f32 %v1142, %v1185
  %v1212 = vadd.f32 %v1143, %v1185
  %v1213 = vadd.f32 %v1144, %v1185
  %v1214 = vadd.f32 %v1145, %v1185
  %v1215 = vadd.f32 %v1146, %v1185
  %v1216 = vadd.f32 %v1147, %v1185
  %v1217 = vadd.f32 %v1148, %v1185
  %v1218 = vadd.f32 %v1149, %v1185
  %v1219 = vadd.f32 %v1150, %v1185
  %v1220 = vadd.f32 %v1151, %v1185
  %v1221 = vadd.f32 %v1152, %v1185
  %v1222 = vadd.f32 %v1153, %v1185
  %v1223 = vadd.f32 %v1154, %v1185
  %v1224 = vadd.f32 %v1155, %v1185
  %v1225 = vadd.f32 %v1156, %v1185
  %v1226 = vadd.f32 %v1157, %v1185
  %v1227 = vadd.f32 %v1158, %v1185
  %v1228 = vadd.f32 %v1159, %v1185
  %v1229 = vadd.f32 %v1160, %v1185
  %v1230 = vadd.f32 %v1161, %v1185
  %v1231 = vadd.f32 %v1162, %v1185
  %v1232 = vadd.f32 %v1163, %v1185
  %v1233 = vadd.f32 %v1164, %v1185
  %v1234 = vadd.f32 %v1165, %v1185
  %v1235 = vadd.f32 %v1166, %v1185
  %v1236 = vadd.f32 %v1167, %v1185
  %v1237 = vadd.f32 %v1168, %v1185
  %v1238 = vadd.f32 %v1169, %v1185
  %v1239 = vadd.f32 %v1170, %v1185
  %v1240 = vadd.f32 %v1171, %v1185
  %v1241 = vadd.f32 %v1172, %v1185
  %v1242 = vadd.f32 %v1173, %v1185
  %v1243 = vadd.f32 %v1174, %v1185
  %v1244 = vadd.f32 %v1175, %v1185
  %v1245 = vadd.f32 %v1176, %v1185
  %v1246 = vadd.f32 %v1177, %v1185
  %v1247 = vadd.f32 %v1178, %v1185
  %v1248 = vadd.f32 %v1179, %v1185
  %v1249 = vadd.f32 %v1180, %v1185
  %v1250 = vmax.f32 %v1186, 0.0
  %v1251 = vmax.f32 %v1187, 0.0
  %v1252 = vmax.f32 %v1188, 0.0
  %v1253 = vmax.f32 %v1189, 0.0
  %v1254 = vmax.f32 %v1190, 0.0
  %v1255 = vmax.f32 %v1191, 0.0
  %v1256 = vmax.f32 %v1192, 0.0
  %v1257 = vmax.f32 %v1193, 0.0
  %v1258 = vmax.f32 %v1194, 0.0
  %v1259 = vmax.f32 %v1195, 0.0
  %v1260 = vmax.f32 %v1196, 0.0
  %v1261 = vmax.f32 %v1197, 0.0
  %v1262 = vmax.f32 %v1198, 0.0
  %v1263 = vmax.f32 %v1199, 0.0
  %v1264 = vmax.f32 %v1200, 0.0
  %v1265 = vmax.f32 %v1201, 0.0
  %v1266 = vmax.f32 %v1202, 0.0
  %v1267 = vmax.f32 %v1203, 0.0
  %v1268 = vmax.f32 %v1204, 0.0
  %v1269 = vmax.f32 %v1205, 0.0
  %v1270 = vmax.f32 %v1206, 0.0
  %v1271 = vmax.f32 %v1207, 0.0
  %v1272 = vmax.f32 %v1208, 0.0
  %v1273 = vmax.f32 %v1209, 0.0
  %v1274 = vmax.f32 %v1210, 0.0
  %v1275 = vmax.f32 %v1211, 0.0
  %v1276 = vmax.f32 %v1212, 0.0
  %v1277 = vmax.f32 %v1213, 0.0
  %v1278 = vmax.f32 %v1214, 0.0
  %v1279 = vmax.f32 %v1215, 0.0
  %v1280 = vmax.f32 %v1216, 0.0
  %v1281 = vmax.f32 %v1217, 0.0
  %v1282 = vmax.f32 %v1218, 0.0
  %v1283 = vmax.f32 %v1219, 0.0
  %v1284 = vmax.f32 %v1220, 0.0
  %v1285 = vmax.f32 %v1221, 0.0
  %v1286 = vmax.f32 %v1222, 0.0
  %v1287 = vmax.f32 %v1223, 0.0
  %v1288 = vmax.f32 %v1224, 0.0
  %v1289 = vmax.f32 %v1225, 0.0
  %v1290 = vmax.f32 %v1226, 0.0
  %v1291 = vmax.f32 %v1227, 0.0
  %v1292 = vmax.f32 %v1228, 0.0
  %v1293 = vmax.f32 %v1229, 0.0
  %v1294 = vmax.f32 %v1230, 0.0
  %v1295 = vmax.f32 %v1231, 0.0
  %v1296 = vmax.f32 %v1232, 0.0
  %v1297 = vmax.f32 %v1233, 0.0
  %v1298 = vmax.f32 %v1234, 0.0
  %v1299 = vmax.f32 %v1235, 0.0
  %v1300 = vmax.f32 %v1236, 0.0
  %v1301 = vmax.f32 %v1237, 0.0
  %v1302 = vmax.f32 %v1238, 0.0
  %v1303 = vmax.f32 %v1239, 0.0
  %v1304 = vmax.f32 %v1240, 0.0
  %v1305 = vmax.f32 %v1241, 0.0
  %v1306 = vmax.f32 %v1242, 0.0
  %v1307 = vmax.f32 %v1243, 0.0
  %v1308 = vmax.f32 %v1244, 0.0
  %v1309 = vmax.f32 %v1245, 0.0
  %v1310 = vmax.f32 %v1246, 0.0
  %v1311 = vmax.f32 %v1247, 0.0
  %v1312 = vmax.f32 %v1248, 0.0
  %v1313 = vmax.f32 %v1249, 0.0
  %v1314 = vpack.c.bf16 %v1251, %v1250
  %v1315 = vpack.c.bf16 %v1253, %v1252
  %v1316 = vpack.c.bf16 %v1255, %v1254
  %v1317 = vpack.c.bf16 %v1257, %v1256
  %v1318 = vpack.c.bf16 %v1259, %v1258
  %v1319 = vpack.c.bf16 %v1261, %v1260
  %v1320 = vpack.c.bf16 %v1263, %v1262
  %v1321 = vpack.c.bf16 %v1265, %v1264
  %v1322 = vpack.c.bf16 %v1267, %v1266
  %v1323 = vpack.c.bf16 %v1269, %v1268
  %v1324 = vpack.c.bf16 %v1271, %v1270
  %v1325 = vpack.c.bf16 %v1273, %v1272
  %v1326 = vpack.c.bf16 %v1275, %v1274
  %v1327 = vpack.c.bf16 %v1277, %v1276
  %v1328 = vpack.c.bf16 %v1279, %v1278
  %v1329 = vpack.c.bf16 %v1281, %v1280
  %v1330 = vpack.c.bf16 %v1283, %v1282
  %v1331 = vpack.c.bf16 %v1285, %v1284
  %v1332 = vpack.c.bf16 %v1287, %v1286
  %v1333 = vpack.c.bf16 %v1289, %v1288
  %v1334 = vpack.c.bf16 %v1291, %v1290
  %v1335 = vpack.c.bf16 %v1293, %v1292
  %v1336 = vpack.c.bf16 %v1295, %v1294
  %v1337 = vpack.c.bf16 %v1297, %v1296
  %v1338 = vpack.c.bf16 %v1299, %v1298
  %v1339 = vpack.c.bf16 %v1301, %v1300
  %v1340 = vpack.c.bf16 %v1303, %v1302
  %v1341 = vpack.c.bf16 %v1305, %v1304
  %v1342 = vpack.c.bf16 %v1307, %v1306
  %v1343 = vpack.c.bf16 %v1309, %v1308
  %v1344 = vpack.c.bf16 %v1311, %v1310
  %v1345 = vpack.c.bf16 %v1313, %v1312
  %v1346 = vld [vmem:[%s5] sm:$0xf]
  %v1347 = vld [vmem:[%s5 + $0x4] sm:$0xf]
  %v1348 = vld [vmem:[%s5 + $0x8] sm:$0xf]
  %v1349 = vld [vmem:[%s5 + $0xc] sm:$0xf]
  %v1350 = vld [vmem:[%s5 + $0x10] sm:$0xf]
  %v1351 = vld [vmem:[%s5 + $0x14] sm:$0xf]
  %v1352 = vld [vmem:[%s5 + $0x18] sm:$0xf]
  %v1353 = vld [vmem:[%s5 + $0x1c] sm:$0xf]
  %v1354 = vld [vmem:[%s5 + $0x20] sm:$0xf]
  %v1355 = vld [vmem:[%s5 + $0x24] sm:$0xf]
  %v1356 = vld [vmem:[%s5 + $0x28] sm:$0xf]
  %v1357 = vld [vmem:[%s5 + $0x2c] sm:$0xf]
  %v1358 = vld [vmem:[%s5 + $0x30] sm:$0xf]
  %v1359 = vld [vmem:[%s5 + $0x34] sm:$0xf]
  %v1360 = vld [vmem:[%s5 + $0x38] sm:$0xf]
  %v1361 = vld [vmem:[%s5 + $0x3c] sm:$0xf]
  %v1362 = vld [vmem:[%s6] sm:$0x1]
  %v1364 = vlaneseq
  %v1365 = vshrl.u32 %v1364, 7
  %v1366 = vsub.s32 0, %v1365
  %v1367 = vrot.slane %v1362, %v1366
  %v1385 = vunpack.c.l.b16 %v1346
  %v1386 = vunpack.c.l.b16 %v1347
  %v1387 = vunpack.c.l.b16 %v1348
  %v1388 = vunpack.c.l.b16 %v1349
  %v1389 = vunpack.c.l.b16 %v1350
  %v1390 = vunpack.c.l.b16 %v1351
  %v1391 = vunpack.c.l.b16 %v1352
  %v1392 = vunpack.c.l.b16 %v1353
  %v1393 = vunpack.c.l.b16 %v1354
  %v1394 = vunpack.c.l.b16 %v1355
  %v1395 = vunpack.c.l.b16 %v1356
  %v1396 = vunpack.c.l.b16 %v1357
  %v1397 = vunpack.c.l.b16 %v1358
  %v1398 = vunpack.c.l.b16 %v1359
  %v1399 = vunpack.c.l.b16 %v1360
  %v1400 = vunpack.c.l.b16 %v1361
  %v1401 = vpack.c.b16 %v1386, %v1385
  %v1402 = vpack.c.b16 %v1388, %v1387
  %v1403 = vpack.c.b16 %v1390, %v1389
  %v1404 = vpack.c.b16 %v1392, %v1391
  %v1405 = vpack.c.b16 %v1394, %v1393
  %v1406 = vpack.c.b16 %v1396, %v1395
  %v1407 = vpack.c.b16 %v1398, %v1397
  %v1408 = vpack.c.b16 %v1400, %v1399
  %1417 = vmatprep.subr.bf16.mxu0 0
  %1418 = vmatpush1.bf16.msra.mxu0 %v1408
  %1419 = vmatprep.subr.bf16.mxu0 0
  %1420 = vmatpush1.bf16.msra.mxu0 %v1407
  %1421 = vmatprep.subr.bf16.mxu0 0
  %1422 = vmatpush1.bf16.msra.mxu0 %v1406
  %1423 = vmatprep.subr.bf16.mxu0 0
  %1424 = vmatpush1.bf16.msra.mxu0 %v1405
  %1425 = vmatprep.subr.bf16.mxu0 0
  %1426 = vmatpush1.bf16.msra.mxu0 %v1404
  %1427 = vmatprep.subr.bf16.mxu0 0
  %1428 = vmatpush1.bf16.msra.mxu0 %v1403
  %1429 = vmatprep.subr.bf16.mxu0 0
  %1430 = vmatpush1.bf16.msra.mxu0 %v1402
  %1431 = vmatprep.subr.bf16.mxu0 0
  %1432 = vmatpush1.bf16.msra.mxu0 %v1401
  %1433 = vmatprep.subr.bf16.mxu0 0
  %1434 = vmatpush2.bf16.msra.mxu0 0
  %1435 = vmatprep.subr.bf16.mxu0 0
  %1436 = vmatpush2.bf16.msra.mxu0 0
  %1437 = vmatprep.subr.bf16.mxu0 0
  %1438 = vmatpush2.bf16.msra.mxu0 0
  %1439 = vmatprep.subr.bf16.mxu0 0
  %1440 = vmatpush2.bf16.msra.mxu0 0
  %1441 = vmatprep.subr.bf16.mxu0 0
  %1442 = vmatpush2.bf16.msra.mxu0 0
  %1443 = vmatprep.subr.bf16.mxu0 0
  %1444 = vmatpush2.bf16.msra.mxu0 0
  %1445 = vmatprep.subr.bf16.mxu0 0
  %1446 = vmatpush2.bf16.msra.mxu0 0
  %1447 = vmatprep.subr.bf16.mxu0 0
  %1448 = vmatpush2.bf16.msra.mxu0 0
  %1449 = vmatprep.mubr.bf16.mxu0 0
  %1450 = vmatmul.mubr.bf16.gmra.mxu0 %v1314
  %v1451 = vpop.f32.mrf.mxu0
  %v1452 = vadd.f32 %v1367, %v1451
  %v1453 = vpop.f32.mrf.mxu0
  %v1454 = vpop.f32.mrf.mxu0
  %v1455 = vadd.f32 %v1367, %v1454
  %v1456 = vpop.f32.mrf.mxu0
  %1457 = vmatprep.mubr.bf16.mxu0 0
  %1458 = vmatmul.mubr.bf16.gmra.mxu0 %v1315
  %v1459 = vpop.f32.mrf.mxu0
  %v1460 = vadd.f32 %v1367, %v1459
  %v1461 = vpop.f32.mrf.mxu0
  %v1462 = vpop.f32.mrf.mxu0
  %v1463 = vadd.f32 %v1367, %v1462
  %v1464 = vpop.f32.mrf.mxu0
  %1465 = vmatprep.mubr.bf16.mxu0 0
  %1466 = vmatmul.mubr.bf16.gmra.mxu0 %v1316
  %v1467 = vpop.f32.mrf.mxu0
  %v1468 = vadd.f32 %v1367, %v1467
  %v1469 = vpop.f32.mrf.mxu0
  %v1470 = vpop.f32.mrf.mxu0
  %v1471 = vadd.f32 %v1367, %v1470
  %v1472 = vpop.f32.mrf.mxu0
  %1473 = vmatprep.mubr.bf16.mxu0 0
  %1474 = vmatmul.mubr.bf16.gmra.mxu0 %v1317
  %v1475 = vpop.f32.mrf.mxu0
  %v1476 = vadd.f32 %v1367, %v1475
  %v1477 = vpop.f32.mrf.mxu0
  %v1478 = vpop.f32.mrf.mxu0
  %v1479 = vadd.f32 %v1367, %v1478
  %v1480 = vpop.f32.mrf.mxu0
  %1481 = vmatprep.mubr.bf16.mxu0 0
  %1482 = vmatmul.mubr.bf16.gmra.mxu0 %v1318
  %v1483 = vpop.f32.mrf.mxu0
  %v1484 = vadd.f32 %v1367, %v1483
  %v1485 = vpop.f32.mrf.mxu0
  %v1486 = vpop.f32.mrf.mxu0
  %v1487 = vadd.f32 %v1367, %v1486
  %v1488 = vpop.f32.mrf.mxu0
  %1489 = vmatprep.mubr.bf16.mxu0 0
  %1490 = vmatmul.mubr.bf16.gmra.mxu0 %v1319
  %v1491 = vpop.f32.mrf.mxu0
  %v1492 = vadd.f32 %v1367, %v1491
  %v1493 = vpop.f32.mrf.mxu0
  %v1494 = vpop.f32.mrf.mxu0
  %v1495 = vadd.f32 %v1367, %v1494
  %v1496 = vpop.f32.mrf.mxu0
  %1497 = vmatprep.mubr.bf16.mxu0 0
  %1498 = vmatmul.mubr.bf16.gmra.mxu0 %v1320
  %v1499 = vpop.f32.mrf.mxu0
  %v1500 = vadd.f32 %v1367, %v1499
  %v1501 = vpop.f32.mrf.mxu0
  %v1502 = vpop.f32.mrf.mxu0
  %v1503 = vadd.f32 %v1367, %v1502
  %v1504 = vpop.f32.mrf.mxu0
  %1505 = vmatprep.mubr.bf16.mxu0 0
  %1506 = vmatmul.mubr.bf16.gmra.mxu0 %v1321
  %v1507 = vpop.f32.mrf.mxu0
  %v1508 = vadd.f32 %v1367, %v1507
  %v1509 = vpop.f32.mrf.mxu0
  %v1510 = vpop.f32.mrf.mxu0
  %v1511 = vadd.f32 %v1367, %v1510
  %v1512 = vpop.f32.mrf.mxu0
  %1513 = vmatprep.mubr.bf16.mxu0 0
  %1514 = vmatmul.mubr.bf16.gmra.mxu0 %v1322
  %v1515 = vpop.f32.mrf.mxu0
  %v1516 = vadd.f32 %v1367, %v1515
  %v1517 = vpop.f32.mrf.mxu0
  %v1518 = vpop.f32.mrf.mxu0
  %v1519 = vadd.f32 %v1367, %v1518
  %v1520 = vpop.f32.mrf.mxu0
  %1521 = vmatprep.mubr.bf16.mxu0 0
  %1522 = vmatmul.mubr.bf16.gmra.mxu0 %v1323
  %v1523 = vpop.f32.mrf.mxu0
  %v1524 = vadd.f32 %v1367, %v1523
  %v1525 = vpop.f32.mrf.mxu0
  %v1526 = vpop.f32.mrf.mxu0
  %v1527 = vadd.f32 %v1367, %v1526
  %v1528 = vpop.f32.mrf.mxu0
  %1529 = vmatprep.mubr.bf16.mxu0 0
  %1530 = vmatmul.mubr.bf16.gmra.mxu0 %v1324
  %v1531 = vpop.f32.mrf.mxu0
  %v1532 = vadd.f32 %v1367, %v1531
  %v1533 = vpop.f32.mrf.mxu0
  %v1534 = vpop.f32.mrf.mxu0
  %v1535 = vadd.f32 %v1367, %v1534
  %v1536 = vpop.f32.mrf.mxu0
  %1537 = vmatprep.mubr.bf16.mxu0 0
  %1538 = vmatmul.mubr.bf16.gmra.mxu0 %v1325
  %v1539 = vpop.f32.mrf.mxu0
  %v1540 = vadd.f32 %v1367, %v1539
  %v1541 = vpop.f32.mrf.mxu0
  %v1542 = vpop.f32.mrf.mxu0
  %v1543 = vadd.f32 %v1367, %v1542
  %v1544 = vpop.f32.mrf.mxu0
  %1545 = vmatprep.mubr.bf16.mxu0 0
  %1546 = vmatmul.mubr.bf16.gmra.mxu0 %v1326
  %v1547 = vpop.f32.mrf.mxu0
  %v1548 = vadd.f32 %v1367, %v1547
  %v1549 = vpop.f32.mrf.mxu0
  %v1550 = vpop.f32.mrf.mxu0
  %v1551 = vadd.f32 %v1367, %v1550
  %v1552 = vpop.f32.mrf.mxu0
  %1553 = vmatprep.mubr.bf16.mxu0 0
  %1554 = vmatmul.mubr.bf16.gmra.mxu0 %v1327
  %v1555 = vpop.f32.mrf.mxu0
  %v1556 = vadd.f32 %v1367, %v1555
  %v1557 = vpop.f32.mrf.mxu0
  %v1558 = vpop.f32.mrf.mxu0
  %v1559 = vadd.f32 %v1367, %v1558
  %v1560 = vpop.f32.mrf.mxu0
  %1561 = vmatprep.mubr.bf16.mxu0 0
  %1562 = vmatmul.mubr.bf16.gmra.mxu0 %v1328
  %v1563 = vpop.f32.mrf.mxu0
  %v1564 = vadd.f32 %v1367, %v1563
  %v1565 = vpop.f32.mrf.mxu0
  %v1566 = vpop.f32.mrf.mxu0
  %v1567 = vadd.f32 %v1367, %v1566
  %v1568 = vpop.f32.mrf.mxu0
  %1569 = vmatprep.mubr.bf16.mxu0 0
  %1570 = vmatmul.mubr.bf16.gmra.mxu0 %v1329
  %v1571 = vpop.f32.mrf.mxu0
  %v1572 = vadd.f32 %v1367, %v1571
  %v1573 = vpop.f32.mrf.mxu0
  %v1574 = vpop.f32.mrf.mxu0
  %v1575 = vadd.f32 %v1367, %v1574
  %v1576 = vpop.f32.mrf.mxu0
  %1577 = vmatprep.mubr.bf16.mxu0 0
  %1578 = vmatmul.mubr.bf16.gmra.mxu0 %v1330
  %v1579 = vpop.f32.mrf.mxu0
  %v1580 = vadd.f32 %v1367, %v1579
  %v1581 = vpop.f32.mrf.mxu0
  %v1582 = vpop.f32.mrf.mxu0
  %v1583 = vadd.f32 %v1367, %v1582
  %v1584 = vpop.f32.mrf.mxu0
  %1585 = vmatprep.mubr.bf16.mxu0 0
  %1586 = vmatmul.mubr.bf16.gmra.mxu0 %v1331
  %v1587 = vpop.f32.mrf.mxu0
  %v1588 = vadd.f32 %v1367, %v1587
  %v1589 = vpop.f32.mrf.mxu0
  %v1590 = vpop.f32.mrf.mxu0
  %v1591 = vadd.f32 %v1367, %v1590
  %v1592 = vpop.f32.mrf.mxu0
  %1593 = vmatprep.mubr.bf16.mxu0 0
  %1594 = vmatmul.mubr.bf16.gmra.mxu0 %v1332
  %v1595 = vpop.f32.mrf.mxu0
  %v1596 = vadd.f32 %v1367, %v1595
  %v1597 = vpop.f32.mrf.mxu0
  %v1598 = vpop.f32.mrf.mxu0
  %v1599 = vadd.f32 %v1367, %v1598
  %v1600 = vpop.f32.mrf.mxu0
  %1601 = vmatprep.mubr.bf16.mxu0 0
  %1602 = vmatmul.mubr.bf16.gmra.mxu0 %v1333
  %v1603 = vpop.f32.mrf.mxu0
  %v1604 = vadd.f32 %v1367, %v1603
  %v1605 = vpop.f32.mrf.mxu0
  %v1606 = vpop.f32.mrf.mxu0
  %v1607 = vadd.f32 %v1367, %v1606
  %v1608 = vpop.f32.mrf.mxu0
  %1609 = vmatprep.mubr.bf16.mxu0 0
  %1610 = vmatmul.mubr.bf16.gmra.mxu0 %v1334
  %v1611 = vpop.f32.mrf.mxu0
  %v1612 = vadd.f32 %v1367, %v1611
  %v1613 = vpop.f32.mrf.mxu0
  %v1614 = vpop.f32.mrf.mxu0
  %v1615 = vadd.f32 %v1367, %v1614
  %v1616 = vpop.f32.mrf.mxu0
  %1617 = vmatprep.mubr.bf16.mxu0 0
  %1618 = vmatmul.mubr.bf16.gmra.mxu0 %v1335
  %v1619 = vpop.f32.mrf.mxu0
  %v1620 = vadd.f32 %v1367, %v1619
  %v1621 = vpop.f32.mrf.mxu0
  %v1622 = vpop.f32.mrf.mxu0
  %v1623 = vadd.f32 %v1367, %v1622
  %v1624 = vpop.f32.mrf.mxu0
  %1625 = vmatprep.mubr.bf16.mxu0 0
  %1626 = vmatmul.mubr.bf16.gmra.mxu0 %v1336
  %v1627 = vpop.f32.mrf.mxu0
  %v1628 = vadd.f32 %v1367, %v1627
  %v1629 = vpop.f32.mrf.mxu0
  %v1630 = vpop.f32.mrf.mxu0
  %v1631 = vadd.f32 %v1367, %v1630
  %v1632 = vpop.f32.mrf.mxu0
  %1633 = vmatprep.mubr.bf16.mxu0 0
  %1634 = vmatmul.mubr.bf16.gmra.mxu0 %v1337
  %v1635 = vpop.f32.mrf.mxu0
  %v1636 = vadd.f32 %v1367, %v1635
  %v1637 = vpop.f32.mrf.mxu0
  %v1638 = vpop.f32.mrf.mxu0
  %v1639 = vadd.f32 %v1367, %v1638
  %v1640 = vpop.f32.mrf.mxu0
  %1641 = vmatprep.mubr.bf16.mxu0 0
  %1642 = vmatmul.mubr.bf16.gmra.mxu0 %v1338
  %v1643 = vpop.f32.mrf.mxu0
  %v1644 = vadd.f32 %v1367, %v1643
  %v1645 = vpop.f32.mrf.mxu0
  %v1646 = vpop.f32.mrf.mxu0
  %v1647 = vadd.f32 %v1367, %v1646
  %v1648 = vpop.f32.mrf.mxu0
  %1649 = vmatprep.mubr.bf16.mxu0 0
  %1650 = vmatmul.mubr.bf16.gmra.mxu0 %v1339
  %v1651 = vpop.f32.mrf.mxu0
  %v1652 = vadd.f32 %v1367, %v1651
  %v1653 = vpop.f32.mrf.mxu0
  %v1654 = vpop.f32.mrf.mxu0
  %v1655 = vadd.f32 %v1367, %v1654
  %v1656 = vpop.f32.mrf.mxu0
  %1657 = vmatprep.mubr.bf16.mxu0 0
  %1658 = vmatmul.mubr.bf16.gmra.mxu0 %v1340
  %v1659 = vpop.f32.mrf.mxu0
  %v1660 = vadd.f32 %v1367, %v1659
  %v1661 = vpop.f32.mrf.mxu0
  %v1662 = vpop.f32.mrf.mxu0
  %v1663 = vadd.f32 %v1367, %v1662
  %v1664 = vpop.f32.mrf.mxu0
  %1665 = vmatprep.mubr.bf16.mxu0 0
  %1666 = vmatmul.mubr.bf16.gmra.mxu0 %v1341
  %v1667 = vpop.f32.mrf.mxu0
  %v1668 = vadd.f32 %v1367, %v1667
  %v1669 = vpop.f32.mrf.mxu0
  %v1670 = vpop.f32.mrf.mxu0
  %v1671 = vadd.f32 %v1367, %v1670
  %v1672 = vpop.f32.mrf.mxu0
  %1673 = vmatprep.mubr.bf16.mxu0 0
  %1674 = vmatmul.mubr.bf16.gmra.mxu0 %v1342
  %v1675 = vpop.f32.mrf.mxu0
  %v1676 = vadd.f32 %v1367, %v1675
  %v1677 = vpop.f32.mrf.mxu0
  %v1678 = vpop.f32.mrf.mxu0
  %v1679 = vadd.f32 %v1367, %v1678
  %v1680 = vpop.f32.mrf.mxu0
  %1681 = vmatprep.mubr.bf16.mxu0 0
  %1682 = vmatmul.mubr.bf16.gmra.mxu0 %v1343
  %v1683 = vpop.f32.mrf.mxu0
  %v1684 = vadd.f32 %v1367, %v1683
  %v1685 = vpop.f32.mrf.mxu0
  %v1686 = vpop.f32.mrf.mxu0
  %v1687 = vadd.f32 %v1367, %v1686
  %v1688 = vpop.f32.mrf.mxu0
  %1689 = vmatprep.mubr.bf16.mxu0 0
  %1690 = vmatmul.mubr.bf16.gmra.mxu0 %v1344
  %v1691 = vpop.f32.mrf.mxu0
  %v1692 = vadd.f32 %v1367, %v1691
  %v1693 = vpop.f32.mrf.mxu0
  %v1694 = vpop.f32.mrf.mxu0
  %v1695 = vadd.f32 %v1367, %v1694
  %v1696 = vpop.f32.mrf.mxu0
  %1697 = vmatprep.mubr.bf16.mxu0 0
  %1698 = vmatmul.mubr.bf16.gmra.mxu0 %v1345
  %v1699 = vpop.f32.mrf.mxu0
  %v1700 = vadd.f32 %v1367, %v1699
  %v1701 = vpop.f32.mrf.mxu0
  %v1702 = vpop.f32.mrf.mxu0
  %v1703 = vadd.f32 %v1367, %v1702
  %v1704 = vpop.f32.mrf.mxu0
  %1705 = vdwg.mxu0
  %vm1706 = vcmask 130048
  %1707 = vst.msk [vmem:[%s7] sm:$0xff] %vm1706, %v1452
  %1708 = vst.msk [vmem:[%s7 + $0x8] sm:$0xff] %vm1706, %v1455
  %1709 = vst.msk [vmem:[%s7 + $0x10] sm:$0xff] %vm1706, %v1460
  %1710 = vst.msk [vmem:[%s7 + $0x18] sm:$0xff] %vm1706, %v1463
  %1711 = vst.msk [vmem:[%s7 + $0x20] sm:$0xff] %vm1706, %v1468
  %1712 = vst.msk [vmem:[%s7 + $0x28] sm:$0xff] %vm1706, %v1471
  %1713 = vst.msk [vmem:[%s7 + $0x30] sm:$0xff] %vm1706, %v1476
  %1714 = vst.msk [vmem:[%s7 + $0x38] sm:$0xff] %vm1706, %v1479
  %1715 = vst.msk [vmem:[%s7 + $0x40] sm:$0xff] %vm1706, %v1484
  %1716 = vst.msk [vmem:[%s7 + $0x48] sm:$0xff] %vm1706, %v1487
  %1717 = vst.msk [vmem:[%s7 + $0x50] sm:$0xff] %vm1706, %v1492
  %1718 = vst.msk [vmem:[%s7 + $0x58] sm:$0xff] %vm1706, %v1495
  %1719 = vst.msk [vmem:[%s7 + $0x60] sm:$0xff] %vm1706, %v1500
  %1720 = vst.msk [vmem:[%s7 + $0x68] sm:$0xff] %vm1706, %v1503
  %1721 = vst.msk [vmem:[%s7 + $0x70] sm:$0xff] %vm1706, %v1508
  %1722 = vst.msk [vmem:[%s7 + $0x78] sm:$0xff] %vm1706, %v1511
  %1723 = vst.msk [vmem:[%s7 + $0x80] sm:$0xff] %vm1706, %v1516
  %1724 = vst.msk [vmem:[%s7 + $0x88] sm:$0xff] %vm1706, %v1519
  %1725 = vst.msk [vmem:[%s7 + $0x90] sm:$0xff] %vm1706, %v1524
  %1726 = vst.msk [vmem:[%s7 + $0x98] sm:$0xff] %vm1706, %v1527
  %1727 = vst.msk [vmem:[%s7 + $0xa0] sm:$0xff] %vm1706, %v1532
  %1728 = vst.msk [vmem:[%s7 + $0xa8] sm:$0xff] %vm1706, %v1535
  %1729 = vst.msk [vmem:[%s7 + $0xb0] sm:$0xff] %vm1706, %v1540
  %1730 = vst.msk [vmem:[%s7 + $0xb8] sm:$0xff] %vm1706, %v1543
  %1731 = vst.msk [vmem:[%s7 + $0xc0] sm:$0xff] %vm1706, %v1548
  %1732 = vst.msk [vmem:[%s7 + $0xc8] sm:$0xff] %vm1706, %v1551
  %1733 = vst.msk [vmem:[%s7 + $0xd0] sm:$0xff] %vm1706, %v1556
  %1734 = vst.msk [vmem:[%s7 + $0xd8] sm:$0xff] %vm1706, %v1559
  %1735 = vst.msk [vmem:[%s7 + $0xe0] sm:$0xff] %vm1706, %v1564
  %1736 = vst.msk [vmem:[%s7 + $0xe8] sm:$0xff] %vm1706, %v1567
  %1737 = vst.msk [vmem:[%s7 + $0xf0] sm:$0xff] %vm1706, %v1572
  %1738 = vst.msk [vmem:[%s7 + $0xf8] sm:$0xff] %vm1706, %v1575
  %1739 = vst.msk [vmem:[%s7 + $0x100] sm:$0xff] %vm1706, %v1580
  %1740 = vst.msk [vmem:[%s7 + $0x108] sm:$0xff] %vm1706, %v1583
  %1741 = vst.msk [vmem:[%s7 + $0x110] sm:$0xff] %vm1706, %v1588
  %1742 = vst.msk [vmem:[%s7 + $0x118] sm:$0xff] %vm1706, %v1591
  %1743 = vst.msk [vmem:[%s7 + $0x120] sm:$0xff] %vm1706, %v1596
  %1744 = vst.msk [vmem:[%s7 + $0x128] sm:$0xff] %vm1706, %v1599
  %1745 = vst.msk [vmem:[%s7 + $0x130] sm:$0xff] %vm1706, %v1604
  %1746 = vst.msk [vmem:[%s7 + $0x138] sm:$0xff] %vm1706, %v1607
  %1747 = vst.msk [vmem:[%s7 + $0x140] sm:$0xff] %vm1706, %v1612
  %1748 = vst.msk [vmem:[%s7 + $0x148] sm:$0xff] %vm1706, %v1615
  %1749 = vst.msk [vmem:[%s7 + $0x150] sm:$0xff] %vm1706, %v1620
  %1750 = vst.msk [vmem:[%s7 + $0x158] sm:$0xff] %vm1706, %v1623
  %1751 = vst.msk [vmem:[%s7 + $0x160] sm:$0xff] %vm1706, %v1628
  %1752 = vst.msk [vmem:[%s7 + $0x168] sm:$0xff] %vm1706, %v1631
  %1753 = vst.msk [vmem:[%s7 + $0x170] sm:$0xff] %vm1706, %v1636
  %1754 = vst.msk [vmem:[%s7 + $0x178] sm:$0xff] %vm1706, %v1639
  %1755 = vst.msk [vmem:[%s7 + $0x180] sm:$0xff] %vm1706, %v1644
  %1756 = vst.msk [vmem:[%s7 + $0x188] sm:$0xff] %vm1706, %v1647
  %1757 = vst.msk [vmem:[%s7 + $0x190] sm:$0xff] %vm1706, %v1652
  %1758 = vst.msk [vmem:[%s7 + $0x198] sm:$0xff] %vm1706, %v1655
  %1759 = vst.msk [vmem:[%s7 + $0x1a0] sm:$0xff] %vm1706, %v1660
  %1760 = vst.msk [vmem:[%s7 + $0x1a8] sm:$0xff] %vm1706, %v1663
  %1761 = vst.msk [vmem:[%s7 + $0x1b0] sm:$0xff] %vm1706, %v1668
  %1762 = vst.msk [vmem:[%s7 + $0x1b8] sm:$0xff] %vm1706, %v1671
  %1763 = vst.msk [vmem:[%s7 + $0x1c0] sm:$0xff] %vm1706, %v1676
  %1764 = vst.msk [vmem:[%s7 + $0x1c8] sm:$0xff] %vm1706, %v1679
  %1765 = vst.msk [vmem:[%s7 + $0x1d0] sm:$0xff] %vm1706, %v1684
  %1766 = vst.msk [vmem:[%s7 + $0x1d8] sm:$0xff] %vm1706, %v1687
  %1767 = vst.msk [vmem:[%s7 + $0x1e0] sm:$0xff] %vm1706, %v1692
  %1768 = vst.msk [vmem:[%s7 + $0x1e8] sm:$0xff] %vm1706, %v1695
  %1769 = vst.msk [vmem:[%s7 + $0x1f0] sm:$0xff] %vm1706, %v1700
  %1770 = vst.msk [vmem:[%s7 + $0x1f8] sm:$0xff] %vm1706, %v1703
  // Predicated region
  $region30: #{tpu_custom_call.1} parent=0 // pred_check
    _
  $region31: #{tpu_custom_call.1} parent=0 // pred_check_branch
    %1772 = sbr.rel (0) target = $region33
  $region32: #{tpu_custom_call.1} parent=0 // pred_region
    _
  $region33: #{tpu_custom_call.1} parent=0 // pred_fallthru
    _
  // Predicated region
  $region34: #{tpu_custom_call.1} parent=0 // pred_check
    _
  $region35: #{tpu_custom_call.1} parent=0 // pred_check_branch
    %1774 = sbr.rel (0) target = $region37
  $region36: #{tpu_custom_call.1} parent=0 // pred_region
    _
  $region37: #{tpu_custom_call.1} parent=0 // pred_fallthru
    _

</llo_original>
